<compile_context>
chip_gen: v7x
topology: tpu7x:2x2x1
jax: 0.10.0
libtpu: 0.0.40
codegen_flags: <defaults>
</compile_context>

<pallas_src>
import math

import jax
import jax.numpy as jnp
from jax import lax
from jax.experimental import pallas as pl
from jax.experimental.pallas import tpu as pltpu

BN_EPS = 1e-5
CIN = 40          # mel bins (fixed by the module)
K = 3             # conv kernel / pool kernel
H = 128           # hidden_size (config)
FC_OUT = 128      # fc output size (fixed by the module)
CONV_CHUNK = 512  # pooled rows per in-kernel conv chunk (bounds f32 temporaries ~1.5 MB)


# ---------------------------------------------------------------------------
# Kernel 1: Conv1d (3 shifted taps, BN folded) + ReLU + MaxPool1d(3,3), one batch
#           element per grid step, full time axis per block.
#   in : x  (W+2, 40)  bf16   conv-padded NWC slice of one batch element
#        w  (3, 40, H) bf16   per-tap conv weights with BN scale folded in
#        b  (1, H)     f32    conv bias with BN mean/beta folded in
#   out: o  (L, H)     bf16   pooled activations, L = W // 3
# ---------------------------------------------------------------------------
def conv_bn_relu_pool_kernel(x_ref, w_ref, b_ref, o_ref):
    L, Hc = o_ref.shape
    b = b_ref[...]
    w0, w1, w2 = w_ref[0], w_ref[1], w_ref[2]
    step = min(L, CONV_CHUNK)
    for lc in range(0, L, step):                       # static (unrolled) chunk loop
        cl = min(step, L - lc)
        t0, ct = 3 * lc, 3 * cl
        acc = jnp.dot(x_ref[t0:t0 + ct, :], w0, preferred_element_type=jnp.float32)
        acc = acc + jnp.dot(x_ref[t0 + 1:t0 + ct + 1, :], w1,
                            preferred_element_type=jnp.float32)
        acc = acc + jnp.dot(x_ref[t0 + 2:t0 + ct + 2, :], w2,
                            preferred_element_type=jnp.float32)
        y = jnp.maximum(acc + b, 0.0)                  # folded-BN bias + ReLU
        o_ref[lc:lc + cl, :] = jnp.max(y.reshape(cl, 3, Hc), axis=1).astype(o_ref.dtype)


# ---------------------------------------------------------------------------
# Kernel 2: 2-layer LSTM over the pooled sequence (whole batch at once),
#           last hidden -> Linear + Sigmoid.
#   in : seq  (L*B, H) bf16   time-major rows (row = t*B + b)
#        wih0 (H, 4H)  bf16 ; whh0 (H, 4H) bf16 ; b0 (1, 4H) f32  (b_ih0 + b_hh0)
#        w1   (2H, 4H) bf16   fused [wih1 ; whh1] ; b1 (1, 4H) f32 (b_ih1 + b_hh1)
#        wfc  (H, 128) bf16 ; bfc (1, 128) f32
#   out: o    (B, 128) f32
#   scratch: x0 (L*B, 4H) f32  bulk layer-0 input projection (time-major rows)
# ---------------------------------------------------------------------------
def lstm_fc_kernel(seq_ref, wih0_ref, whh0_ref, b0_ref, w1_ref, b1_ref,
                   wfc_ref, bfc_ref, o_ref, x0_ref):
    Bt = o_ref.shape[0]
    Hc = seq_ref.shape[1]
    L = seq_ref.shape[0] // Bt

    # bulk time-parallel input projection for layer 0 (one fat matmul, off the serial path)
    x0_ref[...] = (jnp.dot(seq_ref[...], wih0_ref[...],
                           preferred_element_type=jnp.float32) + b0_ref[...])

    whh0 = whh0_ref[...]
    w1 = w1_ref[...]
    b1 = b1_ref[...]

    def gates_to_hc(g, c):                             # PyTorch gate order: i, f, g, o
        i = jax.nn.sigmoid(g[:, 0 * Hc:1 * Hc])
        f = jax.nn.sigmoid(g[:, 1 * Hc:2 * Hc])
        gg = jnp.tanh(g[:, 2 * Hc:3 * Hc])
        o = jax.nn.sigmoid(g[:, 3 * Hc:4 * Hc])
        c_new = f * c + i * gg
        return o * jnp.tanh(c_new), c_new

    def step(t, carry):
        h0, c0, h1, c1 = carry
        row = t * Bt
        if Bt % 8 == 0:
            row = pl.multiple_of(row, 8)               # aligned sublane slice
        # layer 0: only the recurrent matmul is on the per-step critical path
        g0 = (x0_ref[pl.ds(row, Bt), :]
              + jnp.dot(h0.astype(jnp.bfloat16), whh0,
                        preferred_element_type=jnp.float32))
        h0, c0 = gates_to_hc(g0, c0)
        # layer 1: input + recurrent matmuls fused into one K=256 dot.
        # TODO(synk): on v5e (128-deep MXU) split into two K=128 dots and drop the concat.
        g1 = (jnp.dot(jnp.concatenate([h0, h1], axis=1).astype(jnp.bfloat16), w1,
                      preferred_element_type=jnp.float32) + b1)
        h1, c1 = gates_to_hc(g1, c1)
        return (h0, c0, h1, c1)

    z = jnp.zeros((Bt, Hc), jnp.float32)
    unroll = 4 if Bt <= 16 else 2                      # latency-bound; more vregs at big B
    _, _, h1, _ = lax.fori_loop(0, L, step, (z, z, z, z), unroll=unroll)

    # fc: Linear(H, 128) + Sigmoid (Dropout is identity in eval mode)
    logits = (jnp.dot(h1.astype(jnp.bfloat16), wfc_ref[...],
                      preferred_element_type=jnp.float32) + bfc_ref[...])
    o_ref[...] = jax.nn.sigmoid(logits).astype(o_ref.dtype)


# ---------------------------------------------------------------------------
# Wrapper
# ---------------------------------------------------------------------------
def _vmem_limit(nbytes):
    """Scoped VMEM limit: >= 32 MiB default, <= 75% of physical (v7x-safe)."""
    try:
        cap = pltpu.get_tpu_info().vmem_capacity_bytes
    except Exception:
        cap = 64 * 1024 * 1024
    return int(min(int(0.75 * cap), max(32 * 1024 * 1024, 2 * nbytes)))


def pretrain_forward(x, params):
    """x: (B, 40, W) -> (B, 128)   (eval-mode forward of Pretrain_model_general)."""
    (wc, bc, gamma, beta, mean, var,
     wih0, whh0, bih0, bhh0, wih1, whh1, bih1, bhh1, wfc, bfc) = params
    B, C, W = x.shape
    Hs = wc.shape[0]
    L = W // 3                                   # MaxPool1d(3,3) floors partial windows

    # ---- fold BatchNorm1d (eval: running stats + affine) into conv weight/bias ----
    scale = gamma / jnp.sqrt(var + BN_EPS)                                  # (H,)
    w_taps = (jnp.transpose(wc, (2, 1, 0)) * scale[None, None, :]).astype(jnp.bfloat16)
    b_fold = ((bc - mean) * scale + beta).reshape(1, Hs).astype(jnp.float32)

    # ---- NCW -> NWC + conv padding; the 3 taps are built inside the kernel ----
    x_pad = jnp.pad(jnp.transpose(x, (0, 2, 1)),
                    ((0, 0), (1, 1), (0, 0))).astype(jnp.bfloat16)          # (B, W+2, 40)

    k1_bytes = (2 * (W + 2) * C * 2 + 2 * L * Hs * 2 + K * C * Hs * 2
                + 4 * 3 * min(L, CONV_CHUNK) * Hs * 4)
    conv_out = pl.pallas_call(
        conv_bn_relu_pool_kernel,
        out_shape=jax.ShapeDtypeStruct((B, L, Hs), jnp.bfloat16),
        grid=(B,),
        in_specs=[
            pl.BlockSpec((None, W + 2, C), lambda b: (b, 0, 0)),
            pl.BlockSpec((K, C, Hs), lambda b: (0, 0, 0)),
            pl.BlockSpec((1, Hs), lambda b: (0, 0)),
        ],
        out_specs=pl.BlockSpec((None, L, Hs), lambda b: (b, 0, 0)),
        compiler_params=pltpu.CompilerParams(
            dimension_semantics=("parallel",),
            vmem_limit_bytes=_vmem_limit(k1_bytes)),
    )(x_pad, w_taps, b_fold)

    # ---- time-major handoff (cheap XLA relayout on a small tensor; keeps kernel 2
    #      free of in-kernel transposes/reshapes) ----
    seq_tm = jnp.transpose(conv_out, (1, 0, 2)).reshape(L * B, Hs)          # row = t*B + b

    # ---- LSTM / FC weight re-layout; recurrent weights in bf16 (state stays f32) ----
    wih0_b = wih0.T.astype(jnp.bfloat16)                                    # (H, 4H)
    whh0_b = whh0.T.astype(jnp.bfloat16)                                    # (H, 4H)
    b0 = (bih0 + bhh0).reshape(1, 4 * Hs).astype(jnp.float32)
    w1_b = jnp.concatenate([wih1.T, whh1.T], axis=0).astype(jnp.bfloat16)   # (2H, 4H)
    b1 = (bih1 + bhh1).reshape(1, 4 * Hs).astype(jnp.float32)
    wfc_b = wfc.T.astype(jnp.bfloat16)                                      # (H, 128)
    bfc2 = bfc.reshape(1, FC_OUT).astype(jnp.float32)

    # Whole batch runs the recurrence together -> per-step (B,*) MXU dots.
    # TODO(synk): on v7x, shard the batch across the 2 TensorCores (2 grid steps) when
    #             B >= 16, and drop the x0 scratch to bf16 if L*B*4H*4B nears the budget.
    k2_bytes = (2 * L * B * Hs * 2 + L * B * 4 * Hs * 4
                + 2 * Hs * 4 * Hs * 2 + 2 * Hs * 4 * Hs * 2 + Hs * FC_OUT * 2
                + 16 * B * 4 * Hs * 4)
    out = pl.pallas_call(
        lstm_fc_kernel,
        out_shape=jax.ShapeDtypeStruct((B, FC_OUT), jnp.float32),
        grid=(1,),
        in_specs=[
            pl.BlockSpec((L * B, Hs), lambda i: (0, 0)),
            pl.BlockSpec((Hs, 4 * Hs), lambda i: (0, 0)),
            pl.BlockSpec((Hs, 4 * Hs), lambda i: (0, 0)),
            pl.BlockSpec((1, 4 * Hs), lambda i: (0, 0)),
            pl.BlockSpec((2 * Hs, 4 * Hs), lambda i: (0, 0)),
            pl.BlockSpec((1, 4 * Hs), lambda i: (0, 0)),
            pl.BlockSpec((Hs, FC_OUT), lambda i: (0, 0)),
            pl.BlockSpec((1, FC_OUT), lambda i: (0, 0)),
        ],
        out_specs=pl.BlockSpec((B, FC_OUT), lambda i: (0, 0)),
        scratch_shapes=[pltpu.VMEM((L * B, 4 * Hs), jnp.float32)],
        compiler_params=pltpu.CompilerParams(
            dimension_semantics=("arbitrary",),
            vmem_limit_bytes=_vmem_limit(k2_bytes)),
    )(seq_tm, wih0_b, whh0_b, b0, w1_b, b1, wfc_b, bfc2)

    return out


# ---------------------------------------------------------------------------
# Deterministic parameter init matching the PyTorch module's __init__
# (Kaiming-uniform conv/fc, fresh BN, U(-1/sqrt(H), 1/sqrt(H)) LSTM).
# ---------------------------------------------------------------------------
def init_params(key):
    ks = jax.random.split(key, 10)

    def unif(k, shape, scale):
        return jax.random.uniform(k, shape, jnp.float32, -scale, scale)

    s_conv = math.sqrt(2.0 / (CIN * K)) * math.sqrt(3.0)
    wc = unif(ks[0], (H, CIN, K), s_conv)
    bc = jnp.zeros((H,), jnp.float32)
    gamma = jnp.ones((H,), jnp.float32)
    beta = jnp.zeros((H,), jnp.float32)
    mean = jnp.zeros((H,), jnp.float32)
    var = jnp.ones((H,), jnp.float32)

    s_l = 1.0 / math.sqrt(H)
    wih0 = unif(ks[1], (4 * H, H), s_l)
    whh0 = unif(ks[2], (4 * H, H), s_l)
    bih0 = unif(ks[3], (4 * H,), s_l)
    bhh0 = unif(ks[4], (4 * H,), s_l)
    wih1 = unif(ks[5], (4 * H, H), s_l)
    whh1 = unif(ks[6], (4 * H, H), s_l)
    bih1 = unif(ks[7], (4 * H,), s_l)
    bhh1 = unif(ks[8], (4 * H,), s_l)

    s_fc = math.sqrt(2.0 / H) * math.sqrt(3.0)
    wfc = unif(ks[9], (FC_OUT, H), s_fc)
    bfc = jnp.zeros((FC_OUT,), jnp.float32)

    return (wc, bc, gamma, beta, mean, var,
            wih0, whh0, bih0, bhh0, wih1, whh1, bih1, bhh1, wfc, bfc)


# Pure-JAX f32 reference (same eval-mode math) for a sanity check.
def reference_forward(x, params):
    (wc, bc, gamma, beta, mean, var,
     wih0, whh0, bih0, bhh0, wih1, whh1, bih1, bhh1, wfc, bfc) = params
    B, C, W = x.shape
    Hs = wc.shape[0]
    xp = jnp.pad(x, ((0, 0), (0, 0), (1, 1)))
    y = jnp.zeros((B, Hs, W), jnp.float32)
    for k in range(K):
        y = y + jnp.einsum('bct,oc->bot', xp[:, :, k:k + W], wc[:, :, k])
    y = y + bc[None, :, None]
    y = ((y - mean[None, :, None]) / jnp.sqrt(var[None, :, None] + BN_EPS)
         * gamma[None, :, None] + beta[None, :, None])
    y = jnp.maximum(y, 0.0)
    L = W // 3
    y = jnp.max(y[:, :, :3 * L].reshape(B, Hs, L, 3), axis=-1)
    seq = jnp.transpose(y, (0, 2, 1))

    def cell(x_t, h, c, wih, whh, bih, bhh):
        g = x_t @ wih.T + bih + h @ whh.T + bhh
        i = jax.nn.sigmoid(g[:, :Hs])
        f = jax.nn.sigmoid(g[:, Hs:2 * Hs])
        gg = jnp.tanh(g[:, 2 * Hs:3 * Hs])
        o = jax.nn.sigmoid(g[:, 3 * Hs:])
        c = f * c + i * gg
        return o * jnp.tanh(c), c

    h0 = c0 = h1 = c1 = jnp.zeros((B, Hs), jnp.float32)
    for t in range(L):
        h0, c0 = cell(seq[:, t], h0, c0, wih0, whh0, bih0, bhh0)
        h1, c1 = cell(h0, h1, c1, wih1, whh1, bih1, bhh1)
    return jax.nn.sigmoid(h1 @ wfc.T + bfc)


if __name__ == "__main__":
    key = jax.random.PRNGKey(0)
    k_x, k_p = jax.random.split(key)

    B, W = 2, 96                                   # small shapes; W % 3 == 0
    x = jax.random.normal(k_x, (B, CIN, W), jnp.float32)
    params = init_params(k_p)

    out = jax.block_until_ready(pretrain_forward(x, params))
    ref = jax.block_until_ready(reference_forward(x, params))

    assert out.shape == (B, FC_OUT)
    max_err = float(jnp.max(jnp.abs(out - ref)))
    assert max_err < 2.5e-2, ("max_err", max_err)
    print("KERNEL_OK")
</pallas_src>

<mosaic_0001>
module attributes {stable_mosaic.version = 11 : i64} {
  func.func @conv_bn_relu_pool_kernel(%arg0: i32, %arg1: memref<1x98x40xbf16, #tpu.memory_space<vmem>>, %arg2: memref<3x40x128xbf16, #tpu.memory_space<vmem>>, %arg3: memref<1x128xf32, #tpu.memory_space<vmem>>, %arg4: memref<1x32x128xbf16, #tpu.memory_space<vmem>>) attributes {dimension_semantics = [#tpu.dimension_semantics<parallel>], iteration_bounds = array<i64: 2>, scalar_prefetch = 0 : i64, scratch_operands = 0 : i64, tpu.core_type = #tpu.core_type<tc>, window_params = [{transform_indices = @transform_0, window_bounds = array<i64: 1, 98, 40>}, {pipeline_mode = #tpu.pipeline_mode<synchronous>, transform_indices = @transform_1, window_bounds = array<i64: 3, 40, 128>}, {pipeline_mode = #tpu.pipeline_mode<synchronous>, transform_indices = @transform_2, window_bounds = array<i64: 1, 128>}, {transform_indices = @transform_3, window_bounds = array<i64: 1, 32, 128>}]} {
    %c0 = arith.constant 0 : index
    %c0_0 = arith.constant 0 : index
    %0 = vector.load %arg3[%c0, %c0_0] : memref<1x128xf32, #tpu.memory_space<vmem>>, vector<1x128xf32>
    %c0_1 = arith.constant 0 : index
    %c0_2 = arith.constant 0 : index
    %c0_3 = arith.constant 0 : index
    %1 = vector.load %arg2[%c0_1, %c0_2, %c0_3] : memref<3x40x128xbf16, #tpu.memory_space<vmem>>, vector<1x40x128xbf16>
    %2 = vector.shape_cast %1 : vector<1x40x128xbf16> to vector<40x128xbf16>
    %c1 = arith.constant 1 : index
    %c0_4 = arith.constant 0 : index
    %c0_5 = arith.constant 0 : index
    %3 = vector.load %arg2[%c1, %c0_4, %c0_5] : memref<3x40x128xbf16, #tpu.memory_space<vmem>>, vector<1x40x128xbf16>
    %4 = vector.shape_cast %3 : vector<1x40x128xbf16> to vector<40x128xbf16>
    %c2 = arith.constant 2 : index
    %c0_6 = arith.constant 0 : index
    %c0_7 = arith.constant 0 : index
    %5 = vector.load %arg2[%c2, %c0_6, %c0_7] : memref<3x40x128xbf16, #tpu.memory_space<vmem>>, vector<1x40x128xbf16>
    %6 = vector.shape_cast %5 : vector<1x40x128xbf16> to vector<40x128xbf16>
    %c0_8 = arith.constant 0 : index
    %c0_9 = arith.constant 0 : index
    %c0_10 = arith.constant 0 : index
    %7 = vector.load %arg1[%c0_8, %c0_9, %c0_10] : memref<1x98x40xbf16, #tpu.memory_space<vmem>>, vector<1x96x40xbf16>
    %8 = vector.shape_cast %7 : vector<1x96x40xbf16> to vector<96x40xbf16>
    %cst = arith.constant dense<0.000000e+00> : vector<96x128xf32>
    %9 = tpu.matmul %8, %2, %cst {dimension_numbers = #tpu.dot_dimension_numbers<[1], [0], [0], [1], [0, 0, 1, 1], [], []>} : vector<96x40xbf16>, vector<40x128xbf16>, vector<96x128xf32> -> vector<96x128xf32>
    %c0_11 = arith.constant 0 : index
    %c1_12 = arith.constant 1 : index
    %c0_13 = arith.constant 0 : index
    %10 = vector.load %arg1[%c0_11, %c1_12, %c0_13] : memref<1x98x40xbf16, #tpu.memory_space<vmem>>, vector<1x96x40xbf16>
    %11 = vector.shape_cast %10 : vector<1x96x40xbf16> to vector<96x40xbf16>
    %cst_14 = arith.constant dense<0.000000e+00> : vector<96x128xf32>
    %12 = tpu.matmul %11, %4, %cst_14 {dimension_numbers = #tpu.dot_dimension_numbers<[1], [0], [0], [1], [0, 0, 1, 1], [], []>} : vector<96x40xbf16>, vector<40x128xbf16>, vector<96x128xf32> -> vector<96x128xf32>
    %13 = arith.addf %9, %12 : vector<96x128xf32>
    %c0_15 = arith.constant 0 : index
    %c2_16 = arith.constant 2 : index
    %c0_17 = arith.constant 0 : index
    %14 = vector.load %arg1[%c0_15, %c2_16, %c0_17] : memref<1x98x40xbf16, #tpu.memory_space<vmem>>, vector<1x96x40xbf16>
    %15 = vector.shape_cast %14 : vector<1x96x40xbf16> to vector<96x40xbf16>
    %cst_18 = arith.constant dense<0.000000e+00> : vector<96x128xf32>
    %16 = tpu.matmul %15, %6, %cst_18 {dimension_numbers = #tpu.dot_dimension_numbers<[1], [0], [0], [1], [0, 0, 1, 1], [], []>} : vector<96x40xbf16>, vector<40x128xbf16>, vector<96x128xf32> -> vector<96x128xf32>
    %17 = arith.addf %13, %16 : vector<96x128xf32>
    %18 = vector.broadcast %0 : vector<1x128xf32> to vector<96x128xf32>
    %19 = arith.addf %17, %18 : vector<96x128xf32>
    %cst_19 = arith.constant 0.000000e+00 : f32
    %20 = vector.broadcast %cst_19 : f32 to vector<96x128xf32>
    %21 = arith.maximumf %19, %20 : vector<96x128xf32>
    %22 = vector.shape_cast %21 : vector<96x128xf32> to vector<32x3x128xf32>
    %cst_20 = arith.constant dense<0xFF800000> : vector<32x128xf32>
    %23 = vector.multi_reduction <maximumf>, %22, %cst_20 [1] : vector<32x3x128xf32> to vector<32x128xf32>
    %24 = arith.truncf %23 : vector<32x128xf32> to vector<32x128xbf16>
    %c0_21 = arith.constant 0 : index
    %c0_22 = arith.constant 0 : index
    %c0_23 = arith.constant 0 : index
    %25 = vector.load %arg4[%c0_21, %c0_22, %c0_23] : memref<1x32x128xbf16, #tpu.memory_space<vmem>>, vector<1x32x128xbf16>
    %26 = vector.shape_cast %25 : vector<1x32x128xbf16> to vector<32x128xbf16>
    %27 = vector.shape_cast %24 : vector<32x128xbf16> to vector<1x32x128xbf16>
    tpu.vector_store %arg4[%c0_21, %c0_22, %c0_23], %27 {strides = array<i32>} : memref<1x32x128xbf16, #tpu.memory_space<vmem>>, vector<1x32x128xbf16>,
    return
  }
  func.func @transform_0(%arg0: i32) -> (i32, i32, i32) {
    %c0_i32 = arith.constant 0 : i32
    %c0_i32_0 = arith.constant 0 : i32
    %c0_i32_1 = arith.constant 0 : i32
    return %arg0, %c0_i32, %c0_i32_0 : i32, i32, i32
  }
  func.func @transform_1(%arg0: i32) -> (i32, i32, i32) {
    %c0_i32 = arith.constant 0 : i32
    %c0_i32_0 = arith.constant 0 : i32
    %c0_i32_1 = arith.constant 0 : i32
    %c0_i32_2 = arith.constant 0 : i32
    return %c0_i32, %c0_i32_0, %c0_i32_1 : i32, i32, i32
  }
  func.func @transform_2(%arg0: i32) -> (i32, i32) {
    %c0_i32 = arith.constant 0 : i32
    %c0_i32_0 = arith.constant 0 : i32
    %c0_i32_1 = arith.constant 0 : i32
    return %c0_i32, %c0_i32_0 : i32, i32
  }
  func.func @transform_3(%arg0: i32) -> (i32, i32, i32) {
    %c0_i32 = arith.constant 0 : i32
    %c0_i32_0 = arith.constant 0 : i32
    %c0_i32_1 = arith.constant 0 : i32
    return %arg0, %c0_i32, %c0_i32_0 : i32, i32, i32
  }
}

</mosaic_0001>

<llo_original>
// kernel: tpu_custom_call.1
$region0: #{tpu_custom_call.1}
  #allocation0 [shape = 'u32[]', space=smem, size = 0x4, offset = 0x4, fixed_abs, tag = 'smem constant byte address 0x4 - core index']
  #allocation1 [shape = 'u32[144,128]{1,0:T(1,128)}', space=vmem, size = 0x12000, scoped, tag = 'internal scratch']
  %s0 = inlined_call_operand.vmem [shape: bf16[2,98,40], index: 0, kind: input, shape index: {}]
  %s1 = inlined_call_operand.vmem [shape: bf16[3,40,128], index: 1, kind: input, shape index: {}]
  %s2 = inlined_call_operand.vmem [shape: f32[1,128], index: 2, kind: input, shape index: {}]
  %s3 = inlined_call_operand.hbm [shape: bf16[2,32,128], index: 3, kind: output, shape index: {}]
  %s4 = sld [smem:[#allocation0]]
  $region45: #{tpu_custom_call.1} parent=0
    _
  %s6 = ssub.s32 1, %s4
  %s7 = scalar_select 0, %s6, %s4
  $region1: #{tpu_custom_call.1} parent=0
    #allocation2 [shape = 'u8[16384]{0}', space=vmem, size = 0x4000, scoped, tag = 'output window, operand 0']
    #allocation3 [shape = 's32[2]{0}', space=sflag, size = 0x8, scoped, tag = 'scoped memory for tpu_custom_call.1']
    %8 = vsyncpa [#allocation3], 0
    %s9 = scalar_lea.sflag [#allocation3], 1
    %10 = vsyncpa %s9, 0
    loop: start=0, step=1, limit=4
    $region2: #{tpu_custom_call.1} parent=1 // loop_pre_header
      _
    $region3: #{tpu_custom_call.1} parent=1 // loop_header
      %s12 = sphi 0, %s16
      %p13 = scmp.ge.s32.totalorder %s12, 4
      %s22 = sphi 0, %s24
      %s25 = sphi 0, %s22
      %s26 = sphi 0, %s25
      %s42 = sphi 0, %s26
      %s46 = sphi 0, %s46
      %s48 = sphi 0, %s46
      %s49 = sphi 0, %s48
      %s63 = sphi 0, %s49
      %s67 = sphi 0, %s67
      %s69 = sphi 0, %s67
      %s70 = sphi 0, %s69
      %s84 = sphi 0, %s70
      %s90 = sphi 0, %s92
      %s93 = sphi 0, %s90
      %s94 = sphi 0, %s93
      %s110 = sphi 0, %s94
    $region4: #{tpu_custom_call.1} parent=1 // loop_header_branch
      %15 = sbr.rel (%p13) target = $region8
    $region5: #{tpu_custom_call.1} parent=1 // loop_body
      %s17 = ssub.s32 %s12, 1
      %s18 = ssub.s32 %s12, 2
      %s19 = sadd.s32 %s12, 1
      %s20 = ssub.s32 %s12, %s19
      %p21 = scmp.eq.s32.totalorder %s20, 0
      %s23 = sadd.s32 %s22, 1
      %s24 = scalar_select %p21, %s22, %s23
      %p27 = pneg %p21
      %p28 = scmp.eq.s32.totalorder %s12, 1
      %p29 = por %p27, %p28
      %p30 = scmp.ne.s32.totalorder %s22, %s25
      %p31 = scmp.eq.s32.totalorder %s12, 0
      %p32 = por %p30, %p31
      %p33 = scmp.ne.s32.totalorder %s22, %s25
      %p34 = scmp.eq.s32.totalorder %s17, 1
      %p35 = por %p33, %p34
      %p36 = scmp.ne.s32.totalorder %s25, %s26
      %p37 = scmp.eq.s32.totalorder %s17, 0
      %p38 = por %p36, %p37
      %p39 = scmp.ne.s32.totalorder %s25, %s26
      %p40 = scmp.eq.s32.totalorder %s18, 1
      %p41 = por %p39, %p40
      %p43 = scmp.ne.s32.totalorder %s26, %s42
      %p44 = scmp.eq.s32.totalorder %s18, 0
      %p45 = por %p43, %p44
      %s47 = sadd.s32 %s46, 1
      %p50 = scmp.eq.s32.totalorder %s12, 1
      %p51 = scmp.ne.s32.totalorder %s46, %s48
      %p52 = scmp.eq.s32.totalorder %s12, 0
      %p53 = por %p51, %p52
      %p54 = scmp.ne.s32.totalorder %s46, %s48
      %p55 = scmp.eq.s32.totalorder %s17, 1
      %p56 = por %p54, %p55
      %p57 = scmp.ne.s32.totalorder %s48, %s49
      %p58 = scmp.eq.s32.totalorder %s17, 0
      %p59 = por %p57, %p58
      %p60 = scmp.ne.s32.totalorder %s48, %s49
      %p61 = scmp.eq.s32.totalorder %s18, 1
      %p62 = por %p60, %p61
      %p64 = scmp.ne.s32.totalorder %s49, %s63
      %p65 = scmp.eq.s32.totalorder %s18, 0
      %p66 = por %p64, %p65
      %s68 = sadd.s32 %s67, 1
      %p71 = scmp.eq.s32.totalorder %s12, 1
      %p72 = scmp.ne.s32.totalorder %s67, %s69
      %p73 = scmp.eq.s32.totalorder %s12, 0
      %p74 = por %p72, %p73
      %p75 = scmp.ne.s32.totalorder %s67, %s69
      %p76 = scmp.eq.s32.totalorder %s17, 1
      %p77 = por %p75, %p76
      %p78 = scmp.ne.s32.totalorder %s69, %s70
      %p79 = scmp.eq.s32.totalorder %s17, 0
      %p80 = por %p78, %p79
      %p81 = scmp.ne.s32.totalorder %s69, %s70
      %p82 = scmp.eq.s32.totalorder %s18, 1
      %p83 = por %p81, %p82
      %p85 = scmp.ne.s32.totalorder %s70, %s84
      %p86 = scmp.eq.s32.totalorder %s18, 0
      %p87 = por %p85, %p86
      %s88 = ssub.s32 %s12, %s19
      %p89 = scmp.eq.s32.totalorder %s88, 0
      %s91 = sadd.s32 %s90, 1
      %s92 = scalar_select %p89, %s90, %s91
      %p95 = pneg %p89
      %p96 = scmp.eq.s32.totalorder %s12, 1
      %p97 = por %p95, %p96
      %p98 = scmp.ne.s32.totalorder %s90, %s93
      %p99 = scmp.eq.s32.totalorder %s12, 0
      %p100 = por %p98, %p99
      %p101 = scmp.ne.s32.totalorder %s90, %s93
      %p102 = scmp.eq.s32.totalorder %s17, 1
      %p103 = por %p101, %p102
      %p104 = scmp.ne.s32.totalorder %s93, %s94
      %p105 = scmp.eq.s32.totalorder %s17, 0
      %p106 = por %p104, %p105
      %p107 = scmp.ne.s32.totalorder %s93, %s94
      %p108 = scmp.eq.s32.totalorder %s18, 1
      %p109 = por %p107, %p108
      %p111 = scmp.ne.s32.totalorder %s94, %s110
      %p112 = scmp.eq.s32.totalorder %s18, 0
      %p113 = por %p111, %p112
      %p114 = scmp.le.s32.totalorder 1, %s12
      %p115 = scmp.lt.s32.totalorder %s12, 3
      %p116 = pnand %p114, %p115
      %p117 = pneg %p116
      // Predicated region
      $region9: #{tpu_custom_call.1} parent=5 // pred_check
        _
      $region10: #{tpu_custom_call.1} parent=5 // pred_check_branch
        %119 = sbr.rel (%p116) target = $region12
      $region11: #{tpu_custom_call.1} parent=5 // pred_region
        %s120 = ssub.s32 %s12, 1
        // Predicated region
        $region13: #{tpu_custom_call.1} parent=11 // pred_check
          %p121 = pneg %p59
        $region14: #{tpu_custom_call.1} parent=11 // pred_check_branch
          %123 = sbr.rel (%p121) target = $region16
        $region15: #{tpu_custom_call.1} parent=11 // pred_region
          _
        $region16: #{tpu_custom_call.1} parent=11 // pred_fallthru
          _
        // Predicated region
        $region17: #{tpu_custom_call.1} parent=11 // pred_check
          %p124 = pneg %p80
        $region18: #{tpu_custom_call.1} parent=11 // pred_check_branch
          %126 = sbr.rel (%p124) target = $region20
        $region19: #{tpu_custom_call.1} parent=11 // pred_region
          _
        $region20: #{tpu_custom_call.1} parent=11 // pred_fallthru
          _
      $region12: #{tpu_custom_call.1} parent=5 // pred_fallthru
        _
      %p127 = scmp.lt.s32.totalorder %s12, 2
      // Predicated region
      $region21: #{tpu_custom_call.1} parent=5 // pred_check
        %p128 = pneg %p127
      $region22: #{tpu_custom_call.1} parent=5 // pred_check_branch
        %130 = sbr.rel (%p128) target = $region24
      $region23: #{tpu_custom_call.1} parent=5 // pred_region
        // Predicated region
        $region25: #{tpu_custom_call.1} parent=23 // pred_check
          %p131 = pneg %p32
        $region26: #{tpu_custom_call.1} parent=23 // pred_check_branch
          %133 = sbr.rel (%p131) target = $region28
        $region27: #{tpu_custom_call.1} parent=23 // pred_region
          %p134 = scmp.lt.s32.totalorder %s12, 1
          %s135 = scalar_select %p134, %s12, 1
          %s136 = smul.addr %s135, 13
          %s137 = smul.addr %s136, 4
          %s138 = scalar_lea.vmem %s0, %s137
        $region28: #{tpu_custom_call.1} parent=23 // pred_fallthru
          _
      $region24: #{tpu_custom_call.1} parent=5 // pred_fallthru
        _
      %p139 = scmp.le.s32.totalorder 1, %s12
      %p140 = scmp.lt.s32.totalorder %s12, 3
      %p141 = pnand %p139, %p140
      %p142 = pneg %p141
      // Predicated region
      $region29: #{tpu_custom_call.1} parent=5 // pred_check
        _
      $region30: #{tpu_custom_call.1} parent=5 // pred_check_branch
        %144 = sbr.rel (%p141) target = $region32
      $region31: #{tpu_custom_call.1} parent=5 // pred_region
        %s145 = ssub.s32 %s12, 1
        %p146 = scmp.lt.s32.totalorder %s17, 1
        %s147 = scalar_select %p146, %s17, 1
        %s148 = smul.addr %s147, 13
        %s149 = smul.addr %s148, 4
        %s150 = scalar_lea.vmem %s0, %s149
        %p151 = pneg %p38
        %p152 = pneg %p35
        %p153 = pneg %p59
        %p154 = pneg %p56
        %p155 = pneg %p80
        %p156 = pneg %p77
        %p157 = pneg %p106
        %p158 = pneg %p103
        %s159 = sand.u32 %s93, 1
        %s160 = scalar_lea.sflag [#allocation3], %s159
        %s161 = sand.u32 %s93, 1
        %s162 = smul.addr %s161, 16
        %s163 = scalar_lea.vmem [#allocation2], %s162
        %p164 = scmp.lt.s32.totalorder %s17, 1
        %s165 = scalar_select %p164, %s17, 1
        %s166 = smul.addr %s165, 13
        %s167 = smul.addr %s166, 4
        %s168 = scalar_lea.vmem %s0, %s167
        %v170 = vld [vmem:[%s2] sm:$0x1]
        %v171 = vld [vmem:[%s1] sm:$0xf]
        %v172 = vld [vmem:[%s1 + $0x4] sm:$0xf]
        %v173 = vld [vmem:[%s1 + $0x8] sm:$0xf]
        %v174 = vld [vmem:[%s1 + $0xc] sm:$0xf]
        %v175 = vld [vmem:[%s1 + $0x10] sm:$0xf]
        %s176 = scalar_lea.vmem %s1, 20
        %v177 = vld [vmem:[%s176] sm:$0xf]
        %v178 = vld [vmem:[%s176 + $0x4] sm:$0xf]
        %v179 = vld [vmem:[%s176 + $0x8] sm:$0xf]
        %v180 = vld [vmem:[%s176 + $0xc] sm:$0xf]
        %v181 = vld [vmem:[%s176 + $0x10] sm:$0xf]
        %s182 = scalar_lea.vmem %s1, 40
        %v183 = vld [vmem:[%s182] sm:$0xf]
        %v184 = vld [vmem:[%s182 + $0x4] sm:$0xf]
        %v185 = vld [vmem:[%s182 + $0x8] sm:$0xf]
        %v186 = vld [vmem:[%s182 + $0xc] sm:$0xf]
        %v187 = vld [vmem:[%s182 + $0x10] sm:$0xf]
        %v188 = vld [vmem:[%s168] sm:$0xf]
        %v189 = vld [vmem:[%s168 + $0x4] sm:$0xf]
        %v190 = vld [vmem:[%s168 + $0x8] sm:$0xf]
        %v191 = vld [vmem:[%s168 + $0xc] sm:$0xf]
        %v192 = vld [vmem:[%s168 + $0x10] sm:$0xf]
        %v193 = vld [vmem:[%s168 + $0x14] sm:$0xf]
        %v194 = vld [vmem:[%s168 + $0x18] sm:$0xf]
        %v195 = vld [vmem:[%s168 + $0x1c] sm:$0xf]
        %v196 = vld [vmem:[%s168 + $0x20] sm:$0xf]
        %v197 = vld [vmem:[%s168 + $0x24] sm:$0xf]
        %v198 = vld [vmem:[%s168 + $0x28] sm:$0xf]
        %v199 = vld [vmem:[%s168 + $0x2c] sm:$0xf]
        %v200 = vld [vmem:[%s168 + $0x30] sm:$0x1]
        %v214 = vunpack.c.l.b16 %v188
        %v215 = vunpack.c.l.b16 %v189
        %v216 = vunpack.c.l.b16 %v190
        %v217 = vunpack.c.l.b16 %v191
        %v218 = vunpack.c.l.b16 %v192
        %v219 = vunpack.c.l.b16 %v193
        %v220 = vunpack.c.l.b16 %v194
        %v221 = vunpack.c.l.b16 %v195
        %v222 = vunpack.c.l.b16 %v196
        %v223 = vunpack.c.l.b16 %v197
        %v224 = vunpack.c.l.b16 %v198
        %v225 = vunpack.c.l.b16 %v199
        %v226 = vunpack.c.l.b16 %v200
        %v227 = vpack.c.b16 %v215, %v214
        %v228 = vpack.c.b16 %v217, %v216
        %v229 = vpack.c.b16 %v219, %v218
        %v230 = vpack.c.b16 %v221, %v220
        %v231 = vpack.c.b16 %v223, %v222
        %v232 = vpack.c.b16 %v225, %v224
        %v233 = vpack.c.b16 %v226, %v226
        %vm234 = vsmask.f32 7424
        %v236 = vshrl.u32 %v227, 16
        %v238 = vshll.u32 %v227, 16
        %v240 = vrot.slane %v238, 1
        %v241 = vor.u32 %v236, %v240
        %v243 = vshll.u32 %v228, 16
        %v245 = vrot.slane %v243, 1
        %v246 = vsel %vm234, %v241, %v245
        %v247 = vshrl.u32 %v228, 16
        %v249 = vor.u32 %v247, %v245
        %v251 = vshll.u32 %v229, 16
        %v253 = vrot.slane %v251, 1
        %v254 = vsel %vm234, %v249, %v253
        %v255 = vshrl.u32 %v229, 16
        %v257 = vor.u32 %v255, %v253
        %v259 = vshll.u32 %v230, 16
        %v261 = vrot.slane %v259, 1
        %v262 = vsel %vm234, %v257, %v261
        %v263 = vshrl.u32 %v230, 16
        %v265 = vor.u32 %v263, %v261
        %v267 = vshll.u32 %v231, 16
        %v269 = vrot.slane %v267, 1
        %v270 = vsel %vm234, %v265, %v269
        %v271 = vshrl.u32 %v231, 16
        %v273 = vor.u32 %v271, %v269
        %v275 = vshll.u32 %v232, 16
        %v277 = vrot.slane %v275, 1
        %v278 = vsel %vm234, %v273, %v277
        %v279 = vshrl.u32 %v232, 16
        %v281 = vor.u32 %v279, %v277
        %v283 = vshll.u32 %v233, 16
        %v285 = vrot.slane %v283, 1
        %v286 = vsel %vm234, %v281, %v285
        %v292 = vunpack.c.l.b16 %v177
        %v293 = vunpack.c.l.b16 %v178
        %v294 = vunpack.c.l.b16 %v179
        %v295 = vunpack.c.l.b16 %v180
        %v296 = vunpack.c.l.b16 %v181
        %v297 = vpack.c.b16 %v293, %v292
        %v298 = vpack.c.b16 %v295, %v294
        %v299 = vpack.c.b16 %v296, %v296
        %vm302 = vcmask 326656
        %v304 = vsel %vm302, %v246, 0
        %v307 = vsel %vm302, %v254, 0
        %v310 = vsel %vm302, %v262, 0
        %v313 = vsel %vm302, %v270, 0
        %v316 = vsel %vm302, %v278, 0
        %v319 = vsel %vm302, %v286, 0
        %vm321 = vcmask 1043456
        %v323 = vsel %vm321, %v299, 0
        %325 = vmatprep.subr.bf16.mxu0 0
        %326 = vmatpush1.bf16.msra.mxu0 %v297
        %327 = vmatprep.subr.bf16.mxu0 0
        %328 = vmatpush1.bf16.msra.mxu0 %v298
        %329 = vmatprep.subr.bf16.mxu0 0
        %330 = vmatpush1.bf16.msra.mxu0 %v323
        %331 = vmatprep.subr.bf16.mxu0 0
        %332 = vmatpush1.bf16.msra.mxu0 0
        %333 = vmatprep.subr.bf16.mxu0 0
        %334 = vmatpush1.bf16.msra.mxu0 0
        %335 = vmatprep.subr.bf16.mxu0 0
        %336 = vmatpush1.bf16.msra.mxu0 0
        %337 = vmatprep.subr.bf16.mxu0 0
        %338 = vmatpush1.bf16.msra.mxu0 0
        %339 = vmatprep.subr.bf16.mxu0 0
        %340 = vmatpush1.bf16.msra.mxu0 0
        %341 = vmatprep.subr.bf16.mxu0 0
        %342 = vmatpush1.bf16.msra.mxu0 0
        %343 = vmatprep.subr.bf16.mxu0 0
        %344 = vmatpush1.bf16.msra.mxu0 0
        %345 = vmatprep.subr.bf16.mxu0 0
        %346 = vmatpush1.bf16.msra.mxu0 0
        %347 = vmatprep.subr.bf16.mxu0 0
        %348 = vmatpush1.bf16.msra.mxu0 0
        %349 = vmatprep.subr.bf16.mxu0 0
        %350 = vmatpush1.bf16.msra.mxu0 0
        %351 = vmatprep.subr.bf16.mxu0 0
        %352 = vmatpush1.bf16.msra.mxu0 0
        %353 = vmatprep.subr.bf16.mxu0 0
        %354 = vmatpush1.bf16.msra.mxu0 0
        %355 = vmatprep.subr.bf16.mxu0 0
        %356 = vmatpush1.bf16.msra.mxu0 0
        %357 = vmatprep.mubr.bf16.mxu0 0
        %358 = vmatmul.mubr.bf16.gmra.mrb[0].mxu0 %v304
        %v359 = vpop.f32.mrb[0].mxu0
        %v360 = vadd.f32 0.0, %v359
        %v361 = vpop.f32.mrb[0].mxu0
        %v362 = vpop.f32.mrb[0].mxu0
        %v363 = vadd.f32 0.0, %v362
        %v364 = vpop.f32.mrb[0].mxu0
        %365 = vmatprep.mubr.bf16.mxu0 0
        %366 = vmatmul.mubr.bf16.gmra.mrb[0].mxu0 %v307
        %v367 = vpop.f32.mrb[0].mxu0
        %v368 = vadd.f32 0.0, %v367
        %v369 = vpop.f32.mrb[0].mxu0
        %v370 = vpop.f32.mrb[0].mxu0
        %v371 = vadd.f32 0.0, %v370
        %v372 = vpop.f32.mrb[0].mxu0
        %373 = vmatprep.mubr.bf16.mxu0 0
        %374 = vmatmul.mubr.bf16.gmra.mrb[0].mxu0 %v310
        %v375 = vpop.f32.mrb[0].mxu0
        %v376 = vadd.f32 0.0, %v375
        %v377 = vpop.f32.mrb[0].mxu0
        %v378 = vpop.f32.mrb[0].mxu0
        %v379 = vadd.f32 0.0, %v378
        %v380 = vpop.f32.mrb[0].mxu0
        %381 = vmatprep.mubr.bf16.mxu0 0
        %382 = vmatmul.mubr.bf16.gmra.mrb[0].mxu0 %v313
        %v383 = vpop.f32.mrb[0].mxu0
        %v384 = vadd.f32 0.0, %v383
        %v385 = vpop.f32.mrb[0].mxu0
        %v386 = vpop.f32.mrb[0].mxu0
        %v387 = vadd.f32 0.0, %v386
        %v388 = vpop.f32.mrb[0].mxu0
        %389 = vmatprep.mubr.bf16.mxu0 0
        %390 = vmatmul.mubr.bf16.gmra.mrb[0].mxu0 %v316
        %v391 = vpop.f32.mrb[0].mxu0
        %v392 = vadd.f32 0.0, %v391
        %v393 = vpop.f32.mrb[0].mxu0
        %v394 = vpop.f32.mrb[0].mxu0
        %v395 = vadd.f32 0.0, %v394
        %v396 = vpop.f32.mrb[0].mxu0
        %397 = vmatprep.mubr.bf16.mxu0 0
        %398 = vmatmul.mubr.bf16.gmra.mrb[0].mxu0 %v319
        %v399 = vpop.f32.mrb[0].mxu0
        %v400 = vadd.f32 0.0, %v399
        %v401 = vpop.f32.mrb[0].mxu0
        %v402 = vpop.f32.mrb[0].mxu0
        %v403 = vadd.f32 0.0, %v402
        %v404 = vpop.f32.mrb[0].mxu0
        %405 = vdwg.mxu0
        %v411 = vunpack.c.l.b16 %v171
        %v412 = vunpack.c.l.b16 %v172
        %v413 = vunpack.c.l.b16 %v173
        %v414 = vunpack.c.l.b16 %v174
        %v415 = vunpack.c.l.b16 %v175
        %v416 = vpack.c.b16 %v412, %v411
        %v417 = vpack.c.b16 %v414, %v413
        %v418 = vpack.c.b16 %v415, %v415
        %v421 = vsel %vm302, %v227, 0
        %v423 = vsel %vm302, %v228, 0
        %v425 = vsel %vm302, %v229, 0
        %v427 = vsel %vm302, %v230, 0
        %v429 = vsel %vm302, %v231, 0
        %v431 = vsel %vm302, %v232, 0
        %v434 = vsel %vm321, %v418, 0
        %436 = vmatprep.subr.bf16.mxu0 0
        %437 = vmatpush1.bf16.msra.mxu0 %v416
        %438 = vmatprep.subr.bf16.mxu0 0
        %439 = vmatpush1.bf16.msra.mxu0 %v417
        %440 = vmatprep.subr.bf16.mxu0 0
        %441 = vmatpush1.bf16.msra.mxu0 %v434
        %442 = vmatprep.subr.bf16.mxu0 0
        %443 = vmatpush1.bf16.msra.mxu0 0
        %444 = vmatprep.subr.bf16.mxu0 0
        %445 = vmatpush1.bf16.msra.mxu0 0
        %446 = vmatprep.subr.bf16.mxu0 0
        %447 = vmatpush1.bf16.msra.mxu0 0
        %448 = vmatprep.subr.bf16.mxu0 0
        %449 = vmatpush1.bf16.msra.mxu0 0
        %450 = vmatprep.subr.bf16.mxu0 0
        %451 = vmatpush1.bf16.msra.mxu0 0
        %452 = vmatprep.subr.bf16.mxu0 0
        %453 = vmatpush1.bf16.msra.mxu0 0
        %454 = vmatprep.subr.bf16.mxu0 0
        %455 = vmatpush1.bf16.msra.mxu0 0
        %456 = vmatprep.subr.bf16.mxu0 0
        %457 = vmatpush1.bf16.msra.mxu0 0
        %458 = vmatprep.subr.bf16.mxu0 0
        %459 = vmatpush1.bf16.msra.mxu0 0
        %460 = vmatprep.subr.bf16.mxu0 0
        %461 = vmatpush1.bf16.msra.mxu0 0
        %462 = vmatprep.subr.bf16.mxu0 0
        %463 = vmatpush1.bf16.msra.mxu0 0
        %464 = vmatprep.subr.bf16.mxu0 0
        %465 = vmatpush1.bf16.msra.mxu0 0
        %466 = vmatprep.subr.bf16.mxu0 0
        %467 = vmatpush1.bf16.msra.mxu0 0
        %468 = vmatprep.mubr.bf16.mxu0 0
        %469 = vmatmul.mubr.bf16.gmra.mrb[0].mxu0 %v421
        %v470 = vpop.f32.mrb[0].mxu0
        %v471 = vadd.f32 %v360, %v470
        %v472 = vpop.f32.mrb[0].mxu0
        %v473 = vpop.f32.mrb[0].mxu0
        %v474 = vadd.f32 %v363, %v473
        %v475 = vpop.f32.mrb[0].mxu0
        %476 = vmatprep.mubr.bf16.mxu0 0
        %477 = vmatmul.mubr.bf16.gmra.mrb[0].mxu0 %v423
        %v478 = vpop.f32.mrb[0].mxu0
        %v479 = vadd.f32 %v368, %v478
        %v480 = vpop.f32.mrb[0].mxu0
        %v481 = vpop.f32.mrb[0].mxu0
        %v482 = vadd.f32 %v371, %v481
        %v483 = vpop.f32.mrb[0].mxu0
        %484 = vmatprep.mubr.bf16.mxu0 0
        %485 = vmatmul.mubr.bf16.gmra.mrb[0].mxu0 %v425
        %v486 = vpop.f32.mrb[0].mxu0
        %v487 = vadd.f32 %v376, %v486
        %v488 = vpop.f32.mrb[0].mxu0
        %v489 = vpop.f32.mrb[0].mxu0
        %v490 = vadd.f32 %v379, %v489
        %v491 = vpop.f32.mrb[0].mxu0
        %492 = vmatprep.mubr.bf16.mxu0 0
        %493 = vmatmul.mubr.bf16.gmra.mrb[0].mxu0 %v427
        %v494 = vpop.f32.mrb[0].mxu0
        %v495 = vadd.f32 %v384, %v494
        %v496 = vpop.f32.mrb[0].mxu0
        %v497 = vpop.f32.mrb[0].mxu0
        %v498 = vadd.f32 %v387, %v497
        %v499 = vpop.f32.mrb[0].mxu0
        %500 = vmatprep.mubr.bf16.mxu0 0
        %501 = vmatmul.mubr.bf16.gmra.mrb[0].mxu0 %v429
        %v502 = vpop.f32.mrb[0].mxu0
        %v503 = vadd.f32 %v392, %v502
        %v504 = vpop.f32.mrb[0].mxu0
        %v505 = vpop.f32.mrb[0].mxu0
        %v506 = vadd.f32 %v395, %v505
        %v507 = vpop.f32.mrb[0].mxu0
        %508 = vmatprep.mubr.bf16.mxu0 0
        %509 = vmatmul.mubr.bf16.gmra.mrb[0].mxu0 %v431
        %v510 = vpop.f32.mrb[0].mxu0
        %v511 = vadd.f32 %v400, %v510
        %v512 = vpop.f32.mrb[0].mxu0
        %v513 = vpop.f32.mrb[0].mxu0
        %v514 = vadd.f32 %v403, %v513
        %v515 = vpop.f32.mrb[0].mxu0
        %516 = vdwg.mxu0
        %v517 = vld [vmem:[%s168] sm:$0xe]
        %v519 = vunpack.c.l.b16 %v517
        %v520 = vpack.c.b16 %v215, %v519
        %vm521 = vcmask 1046528
        %v522 = vrot.slane %v520, 1
        %v523 = vrot.slane %v228, 1
        %v524 = vsel %vm521, %v522, %v523
        %v525 = vrot.slane %v229, 1
        %v526 = vsel %vm521, %v523, %v525
        %v527 = vrot.slane %v230, 1
        %v528 = vsel %vm521, %v525, %v527
        %v529 = vrot.slane %v231, 1
        %v530 = vsel %vm521, %v527, %v529
        %v531 = vrot.slane %v232, 1
        %v532 = vsel %vm521, %v529, %v531
        %v533 = vrot.slane %v233, 1
        %v534 = vsel %vm521, %v531, %v533
        %v540 = vunpack.c.l.b16 %v183
        %v541 = vunpack.c.l.b16 %v184
        %v542 = vunpack.c.l.b16 %v185
        %v543 = vunpack.c.l.b16 %v186
        %v544 = vunpack.c.l.b16 %v187
        %v545 = vpack.c.b16 %v541, %v540
        %v546 = vpack.c.b16 %v543, %v542
        %v547 = vpack.c.b16 %v544, %v544
        %v551 = vsel %vm302, %v524, 0
        %v554 = vsel %vm302, %v526, 0
        %v557 = vsel %vm302, %v528, 0
        %v560 = vsel %vm302, %v530, 0
        %v563 = vsel %vm302, %v532, 0
        %v566 = vsel %vm302, %v534, 0
        %v569 = vsel %vm321, %v547, 0
        %571 = vmatprep.subr.bf16.mxu0 0
        %572 = vmatpush1.bf16.msra.mxu0 %v545
        %573 = vmatprep.subr.bf16.mxu0 0
        %574 = vmatpush1.bf16.msra.mxu0 %v546
        %575 = vmatprep.subr.bf16.mxu0 0
        %576 = vmatpush1.bf16.msra.mxu0 %v569
        %577 = vmatprep.subr.bf16.mxu0 0
        %578 = vmatpush1.bf16.msra.mxu0 0
        %579 = vmatprep.subr.bf16.mxu0 0
        %580 = vmatpush1.bf16.msra.mxu0 0
        %581 = vmatprep.subr.bf16.mxu0 0
        %582 = vmatpush1.bf16.msra.mxu0 0
        %583 = vmatprep.subr.bf16.mxu0 0
        %584 = vmatpush1.bf16.msra.mxu0 0
        %585 = vmatprep.subr.bf16.mxu0 0
        %586 = vmatpush1.bf16.msra.mxu0 0
        %587 = vmatprep.subr.bf16.mxu0 0
        %588 = vmatpush1.bf16.msra.mxu0 0
        %589 = vmatprep.subr.bf16.mxu0 0
        %590 = vmatpush1.bf16.msra.mxu0 0
        %591 = vmatprep.subr.bf16.mxu0 0
        %592 = vmatpush1.bf16.msra.mxu0 0
        %593 = vmatprep.subr.bf16.mxu0 0
        %594 = vmatpush1.bf16.msra.mxu0 0
        %595 = vmatprep.subr.bf16.mxu0 0
        %596 = vmatpush1.bf16.msra.mxu0 0
        %597 = vmatprep.subr.bf16.mxu0 0
        %598 = vmatpush1.bf16.msra.mxu0 0
        %599 = vmatprep.subr.bf16.mxu0 0
        %600 = vmatpush1.bf16.msra.mxu0 0
        %601 = vmatprep.subr.bf16.mxu0 0
        %602 = vmatpush1.bf16.msra.mxu0 0
        %603 = vmatprep.mubr.bf16.mxu0 0
        %604 = vmatmul.mubr.bf16.gmra.mrb[0].mxu0 %v551
        %v605 = vpop.f32.mrb[0].mxu0
        %v606 = vadd.f32 0.0, %v605
        %v607 = vpop.f32.mrb[0].mxu0
        %v608 = vpop.f32.mrb[0].mxu0
        %v609 = vadd.f32 0.0, %v608
        %v610 = vpop.f32.mrb[0].mxu0
        %611 = vmatprep.mubr.bf16.mxu0 0
        %612 = vmatmul.mubr.bf16.gmra.mrb[0].mxu0 %v554
        %v613 = vpop.f32.mrb[0].mxu0
        %v614 = vadd.f32 0.0, %v613
        %v615 = vpop.f32.mrb[0].mxu0
        %v616 = vpop.f32.mrb[0].mxu0
        %v617 = vadd.f32 0.0, %v616
        %v618 = vpop.f32.mrb[0].mxu0
        %619 = vmatprep.mubr.bf16.mxu0 0
        %620 = vmatmul.mubr.bf16.gmra.mrb[0].mxu0 %v557
        %v621 = vpop.f32.mrb[0].mxu0
        %v622 = vadd.f32 0.0, %v621
        %v623 = vpop.f32.mrb[0].mxu0
        %v624 = vpop.f32.mrb[0].mxu0
        %v625 = vadd.f32 0.0, %v624
        %v626 = vpop.f32.mrb[0].mxu0
        %627 = vmatprep.mubr.bf16.mxu0 0
        %628 = vmatmul.mubr.bf16.gmra.mrb[0].mxu0 %v560
        %v629 = vpop.f32.mrb[0].mxu0
        %v630 = vadd.f32 0.0, %v629
        %v631 = vpop.f32.mrb[0].mxu0
        %v632 = vpop.f32.mrb[0].mxu0
        %v633 = vadd.f32 0.0, %v632
        %v634 = vpop.f32.mrb[0].mxu0
        %635 = vmatprep.mubr.bf16.mxu0 0
        %636 = vmatmul.mubr.bf16.gmra.mrb[0].mxu0 %v563
        %v637 = vpop.f32.mrb[0].mxu0
        %v638 = vadd.f32 0.0, %v637
        %v639 = vpop.f32.mrb[0].mxu0
        %v640 = vpop.f32.mrb[0].mxu0
        %v641 = vadd.f32 0.0, %v640
        %v642 = vpop.f32.mrb[0].mxu0
        %643 = vmatprep.mubr.bf16.mxu0 0
        %644 = vmatmul.mubr.bf16.gmra.mrb[0].mxu0 %v566
        %v645 = vpop.f32.mrb[0].mxu0
        %v646 = vadd.f32 0.0, %v645
        %v647 = vpop.f32.mrb[0].mxu0
        %v648 = vpop.f32.mrb[0].mxu0
        %v649 = vadd.f32 0.0, %v648
        %v650 = vpop.f32.mrb[0].mxu0
        %651 = vdwg.mxu0
        %v652 = vadd.f32 %v471, %v606
        %v653 = vadd.f32 %v474, %v609
        %v654 = vadd.f32 %v479, %v614
        %v655 = vadd.f32 %v482, %v617
        %v656 = vadd.f32 %v487, %v622
        %v657 = vadd.f32 %v490, %v625
        %v658 = vadd.f32 %v495, %v630
        %v659 = vadd.f32 %v498, %v633
        %v660 = vadd.f32 %v503, %v638
        %v661 = vadd.f32 %v506, %v641
        %v662 = vadd.f32 %v511, %v646
        %v663 = vadd.f32 %v514, %v649
        %v665 = vlaneseq
        %v666 = vshrl.u32 %v665, 7
        %v667 = vsub.s32 0, %v666
        %v668 = vrot.slane %v170, %v667
        %v670 = vadd.f32 %v652, %v668
        %v671 = vadd.f32 %v653, %v668
        %v672 = vadd.f32 %v654, %v668
        %v673 = vadd.f32 %v655, %v668
        %v674 = vadd.f32 %v656, %v668
        %v675 = vadd.f32 %v657, %v668
        %v676 = vadd.f32 %v658, %v668
        %v677 = vadd.f32 %v659, %v668
        %v678 = vadd.f32 %v660, %v668
        %v679 = vadd.f32 %v661, %v668
        %v680 = vadd.f32 %v662, %v668
        %v681 = vadd.f32 %v663, %v668
        %v682 = vmax.f32 %v670, 0.0
        %v683 = vmax.f32 %v671, 0.0
        %v684 = vmax.f32 %v672, 0.0
        %v685 = vmax.f32 %v673, 0.0
        %v686 = vmax.f32 %v674, 0.0
        %v687 = vmax.f32 %v675, 0.0
        %v688 = vmax.f32 %v676, 0.0
        %v689 = vmax.f32 %v677, 0.0
        %v690 = vmax.f32 %v678, 0.0
        %v691 = vmax.f32 %v679, 0.0
        %v692 = vmax.f32 %v680, 0.0
        %v693 = vmax.f32 %v681, 0.0
        %v706 = vcombine.high %v682, %v682
        %v708 = vunpack.c.l.s4 1966171168
        %v709 = vunpack.c.0.s8 %v708
        %v710 = vlaneseq
        %v711 = vshrl.u32 %v710, 7
        %v712 = vsub.s32 %v709, %v711
        %v713 = vrot.slane %v682, %v712
        %v715 = vunpack.c.l.s4 1966171168
        %v716 = vunpack.c.0.s8 %v715
        %v717 = vlaneseq
        %v718 = vshrl.u32 %v717, 7
        %v719 = vsub.s32 %v716, %v718
        %v720 = vrot.slane %v706, %v719
        %v721 = vcombine.high %v713, %v713
        %v722 = vcombine.high %v720, %v720
        %v724 = vunpack.c.l.s4 1966171168
        %v725 = vunpack.c.0.s8 %v724
        %v726 = vlaneseq
        %v727 = vshrl.u32 %v726, 7
        %v728 = vsub.s32 %v725, %v727
        %v729 = vrot.slane %v713, %v728
        %v731 = vunpack.c.l.s4 1966171168
        %v732 = vunpack.c.0.s8 %v731
        %v733 = vlaneseq
        %v734 = vshrl.u32 %v733, 7
        %v735 = vsub.s32 %v732, %v734
        %v736 = vrot.slane %v720, %v735
        %v738 = vunpack.c.l.s4 1966171168
        %v739 = vunpack.c.0.s8 %v738
        %v740 = vlaneseq
        %v741 = vshrl.u32 %v740, 7
        %v742 = vsub.s32 %v739, %v741
        %v743 = vrot.slane %v721, %v742
        %v745 = vunpack.c.l.s4 1966171168
        %v746 = vunpack.c.0.s8 %v745
        %v747 = vlaneseq
        %v748 = vshrl.u32 %v747, 7
        %v749 = vsub.s32 %v746, %v748
        %v750 = vrot.slane %v722, %v749
        %v751 = vcombine.high %v729, %v729
        %v752 = vcombine.high %v736, %v736
        %v753 = vcombine.high %v743, %v743
        %v754 = vcombine.high %v750, %v750
        %v755 = vcombine.high %v683, %v683
        %v757 = vunpack.c.l.s4 1966171168
        %v758 = vunpack.c.0.s8 %v757
        %v759 = vlaneseq
        %v760 = vshrl.u32 %v759, 7
        %v761 = vsub.s32 %v758, %v760
        %v762 = vrot.slane %v683, %v761
        %v764 = vunpack.c.l.s4 1966171168
        %v765 = vunpack.c.0.s8 %v764
        %v766 = vlaneseq
        %v767 = vshrl.u32 %v766, 7
        %v768 = vsub.s32 %v765, %v767
        %v769 = vrot.slane %v755, %v768
        %v770 = vcombine.high %v762, %v762
        %v771 = vcombine.high %v769, %v769
        %v773 = vunpack.c.l.s4 1966171168
        %v774 = vunpack.c.0.s8 %v773
        %v775 = vlaneseq
        %v776 = vshrl.u32 %v775, 7
        %v777 = vsub.s32 %v774, %v776
        %v778 = vrot.slane %v762, %v777
        %v780 = vunpack.c.l.s4 1966171168
        %v781 = vunpack.c.0.s8 %v780
        %v782 = vlaneseq
        %v783 = vshrl.u32 %v782, 7
        %v784 = vsub.s32 %v781, %v783
        %v785 = vrot.slane %v769, %v784
        %v787 = vunpack.c.l.s4 1966171168
        %v788 = vunpack.c.0.s8 %v787
        %v789 = vlaneseq
        %v790 = vshrl.u32 %v789, 7
        %v791 = vsub.s32 %v788, %v790
        %v792 = vrot.slane %v770, %v791
        %v794 = vunpack.c.l.s4 1966171168
        %v795 = vunpack.c.0.s8 %v794
        %v796 = vlaneseq
        %v797 = vshrl.u32 %v796, 7
        %v798 = vsub.s32 %v795, %v797
        %v799 = vrot.slane %v771, %v798
        %v800 = vcombine.high %v778, %v778
        %v801 = vcombine.high %v785, %v785
        %v802 = vcombine.high %v792, %v792
        %v803 = vcombine.high %v799, %v799
        %v804 = vcombine.high %v684, %v684
        %v806 = vunpack.c.l.s4 1966171168
        %v807 = vunpack.c.0.s8 %v806
        %v808 = vlaneseq
        %v809 = vshrl.u32 %v808, 7
        %v810 = vsub.s32 %v807, %v809
        %v811 = vrot.slane %v684, %v810
        %v813 = vunpack.c.l.s4 1966171168
        %v814 = vunpack.c.0.s8 %v813
        %v815 = vlaneseq
        %v816 = vshrl.u32 %v815, 7
        %v817 = vsub.s32 %v814, %v816
        %v818 = vrot.slane %v804, %v817
        %v819 = vcombine.high %v811, %v811
        %v820 = vcombine.high %v818, %v818
        %v822 = vunpack.c.l.s4 1966171168
        %v823 = vunpack.c.0.s8 %v822
        %v824 = vlaneseq
        %v825 = vshrl.u32 %v824, 7
        %v826 = vsub.s32 %v823, %v825
        %v827 = vrot.slane %v811, %v826
        %v829 = vunpack.c.l.s4 1966171168
        %v830 = vunpack.c.0.s8 %v829
        %v831 = vlaneseq
        %v832 = vshrl.u32 %v831, 7
        %v833 = vsub.s32 %v830, %v832
        %v834 = vrot.slane %v818, %v833
        %v836 = vunpack.c.l.s4 1966171168
        %v837 = vunpack.c.0.s8 %v836
        %v838 = vlaneseq
        %v839 = vshrl.u32 %v838, 7
        %v840 = vsub.s32 %v837, %v839
        %v841 = vrot.slane %v819, %v840
        %v843 = vunpack.c.l.s4 1966171168
        %v844 = vunpack.c.0.s8 %v843
        %v845 = vlaneseq
        %v846 = vshrl.u32 %v845, 7
        %v847 = vsub.s32 %v844, %v846
        %v848 = vrot.slane %v820, %v847
        %v849 = vcombine.high %v827, %v827
        %v850 = vcombine.high %v834, %v834
        %v851 = vcombine.high %v841, %v841
        %v852 = vcombine.high %v848, %v848
        %v853 = vcombine.high %v685, %v685
        %v855 = vunpack.c.l.s4 1966171168
        %v856 = vunpack.c.0.s8 %v855
        %v857 = vlaneseq
        %v858 = vshrl.u32 %v857, 7
        %v859 = vsub.s32 %v856, %v858
        %v860 = vrot.slane %v685, %v859
        %v862 = vunpack.c.l.s4 1966171168
        %v863 = vunpack.c.0.s8 %v862
        %v864 = vlaneseq
        %v865 = vshrl.u32 %v864, 7
        %v866 = vsub.s32 %v863, %v865
        %v867 = vrot.slane %v853, %v866
        %v868 = vcombine.high %v860, %v860
        %v869 = vcombine.high %v867, %v867
        %v871 = vunpack.c.l.s4 1966171168
        %v872 = vunpack.c.0.s8 %v871
        %v873 = vlaneseq
        %v874 = vshrl.u32 %v873, 7
        %v875 = vsub.s32 %v872, %v874
        %v876 = vrot.slane %v860, %v875
        %v878 = vunpack.c.l.s4 1966171168
        %v879 = vunpack.c.0.s8 %v878
        %v880 = vlaneseq
        %v881 = vshrl.u32 %v880, 7
        %v882 = vsub.s32 %v879, %v881
        %v883 = vrot.slane %v867, %v882
        %v885 = vunpack.c.l.s4 1966171168
        %v886 = vunpack.c.0.s8 %v885
        %v887 = vlaneseq
        %v888 = vshrl.u32 %v887, 7
        %v889 = vsub.s32 %v886, %v888
        %v890 = vrot.slane %v868, %v889
        %v892 = vunpack.c.l.s4 1966171168
        %v893 = vunpack.c.0.s8 %v892
        %v894 = vlaneseq
        %v895 = vshrl.u32 %v894, 7
        %v896 = vsub.s32 %v893, %v895
        %v897 = vrot.slane %v869, %v896
        %v898 = vcombine.high %v876, %v876
        %v899 = vcombine.high %v883, %v883
        %v900 = vcombine.high %v890, %v890
        %v901 = vcombine.high %v897, %v897
        %v902 = vcombine.high %v686, %v686
        %v904 = vunpack.c.l.s4 1966171168
        %v905 = vunpack.c.0.s8 %v904
        %v906 = vlaneseq
        %v907 = vshrl.u32 %v906, 7
        %v908 = vsub.s32 %v905, %v907
        %v909 = vrot.slane %v686, %v908
        %v911 = vunpack.c.l.s4 1966171168
        %v912 = vunpack.c.0.s8 %v911
        %v913 = vlaneseq
        %v914 = vshrl.u32 %v913, 7
        %v915 = vsub.s32 %v912, %v914
        %v916 = vrot.slane %v902, %v915
        %v917 = vcombine.high %v909, %v909
        %v918 = vcombine.high %v916, %v916
        %v920 = vunpack.c.l.s4 1966171168
        %v921 = vunpack.c.0.s8 %v920
        %v922 = vlaneseq
        %v923 = vshrl.u32 %v922, 7
        %v924 = vsub.s32 %v921, %v923
        %v925 = vrot.slane %v909, %v924
        %v927 = vunpack.c.l.s4 1966171168
        %v928 = vunpack.c.0.s8 %v927
        %v929 = vlaneseq
        %v930 = vshrl.u32 %v929, 7
        %v931 = vsub.s32 %v928, %v930
        %v932 = vrot.slane %v916, %v931
        %v934 = vunpack.c.l.s4 1966171168
        %v935 = vunpack.c.0.s8 %v934
        %v936 = vlaneseq
        %v937 = vshrl.u32 %v936, 7
        %v938 = vsub.s32 %v935, %v937
        %v939 = vrot.slane %v917, %v938
        %v941 = vunpack.c.l.s4 1966171168
        %v942 = vunpack.c.0.s8 %v941
        %v943 = vlaneseq
        %v944 = vshrl.u32 %v943, 7
        %v945 = vsub.s32 %v942, %v944
        %v946 = vrot.slane %v918, %v945
        %v947 = vcombine.high %v925, %v925
        %v948 = vcombine.high %v932, %v932
        %v949 = vcombine.high %v939, %v939
        %v950 = vcombine.high %v946, %v946
        %v951 = vcombine.high %v687, %v687
        %v953 = vunpack.c.l.s4 1966171168
        %v954 = vunpack.c.0.s8 %v953
        %v955 = vlaneseq
        %v956 = vshrl.u32 %v955, 7
        %v957 = vsub.s32 %v954, %v956
        %v958 = vrot.slane %v687, %v957
        %v960 = vunpack.c.l.s4 1966171168
        %v961 = vunpack.c.0.s8 %v960
        %v962 = vlaneseq
        %v963 = vshrl.u32 %v962, 7
        %v964 = vsub.s32 %v961, %v963
        %v965 = vrot.slane %v951, %v964
        %v966 = vcombine.high %v958, %v958
        %v967 = vcombine.high %v965, %v965
        %v969 = vunpack.c.l.s4 1966171168
        %v970 = vunpack.c.0.s8 %v969
        %v971 = vlaneseq
        %v972 = vshrl.u32 %v971, 7
        %v973 = vsub.s32 %v970, %v972
        %v974 = vrot.slane %v958, %v973
        %v976 = vunpack.c.l.s4 1966171168
        %v977 = vunpack.c.0.s8 %v976
        %v978 = vlaneseq
        %v979 = vshrl.u32 %v978, 7
        %v980 = vsub.s32 %v977, %v979
        %v981 = vrot.slane %v965, %v980
        %v983 = vunpack.c.l.s4 1966171168
        %v984 = vunpack.c.0.s8 %v983
        %v985 = vlaneseq
        %v986 = vshrl.u32 %v985, 7
        %v987 = vsub.s32 %v984, %v986
        %v988 = vrot.slane %v966, %v987
        %v990 = vunpack.c.l.s4 1966171168
        %v991 = vunpack.c.0.s8 %v990
        %v992 = vlaneseq
        %v993 = vshrl.u32 %v992, 7
        %v994 = vsub.s32 %v991, %v993
        %v995 = vrot.slane %v967, %v994
        %v996 = vcombine.high %v974, %v974
        %v997 = vcombine.high %v981, %v981
        %v998 = vcombine.high %v988, %v988
        %v999 = vcombine.high %v995, %v995
        %v1000 = vcombine.high %v688, %v688
        %v1002 = vunpack.c.l.s4 1966171168
        %v1003 = vunpack.c.0.s8 %v1002
        %v1004 = vlaneseq
        %v1005 = vshrl.u32 %v1004, 7
        %v1006 = vsub.s32 %v1003, %v1005
        %v1007 = vrot.slane %v688, %v1006
        %v1009 = vunpack.c.l.s4 1966171168
        %v1010 = vunpack.c.0.s8 %v1009
        %v1011 = vlaneseq
        %v1012 = vshrl.u32 %v1011, 7
        %v1013 = vsub.s32 %v1010, %v1012
        %v1014 = vrot.slane %v1000, %v1013
        %v1015 = vcombine.high %v1007, %v1007
        %v1016 = vcombine.high %v1014, %v1014
        %v1018 = vunpack.c.l.s4 1966171168
        %v1019 = vunpack.c.0.s8 %v1018
        %v1020 = vlaneseq
        %v1021 = vshrl.u32 %v1020, 7
        %v1022 = vsub.s32 %v1019, %v1021
        %v1023 = vrot.slane %v1007, %v1022
        %v1025 = vunpack.c.l.s4 1966171168
        %v1026 = vunpack.c.0.s8 %v1025
        %v1027 = vlaneseq
        %v1028 = vshrl.u32 %v1027, 7
        %v1029 = vsub.s32 %v1026, %v1028
        %v1030 = vrot.slane %v1014, %v1029
        %v1032 = vunpack.c.l.s4 1966171168
        %v1033 = vunpack.c.0.s8 %v1032
        %v1034 = vlaneseq
        %v1035 = vshrl.u32 %v1034, 7
        %v1036 = vsub.s32 %v1033, %v1035
        %v1037 = vrot.slane %v1015, %v1036
        %v1039 = vunpack.c.l.s4 1966171168
        %v1040 = vunpack.c.0.s8 %v1039
        %v1041 = vlaneseq
        %v1042 = vshrl.u32 %v1041, 7
        %v1043 = vsub.s32 %v1040, %v1042
        %v1044 = vrot.slane %v1016, %v1043
        %v1045 = vcombine.high %v1023, %v1023
        %v1046 = vcombine.high %v1030, %v1030
        %v1047 = vcombine.high %v1037, %v1037
        %v1048 = vcombine.high %v1044, %v1044
        %v1049 = vcombine.high %v689, %v689
        %v1051 = vunpack.c.l.s4 1966171168
        %v1052 = vunpack.c.0.s8 %v1051
        %v1053 = vlaneseq
        %v1054 = vshrl.u32 %v1053, 7
        %v1055 = vsub.s32 %v1052, %v1054
        %v1056 = vrot.slane %v689, %v1055
        %v1058 = vunpack.c.l.s4 1966171168
        %v1059 = vunpack.c.0.s8 %v1058
        %v1060 = vlaneseq
        %v1061 = vshrl.u32 %v1060, 7
        %v1062 = vsub.s32 %v1059, %v1061
        %v1063 = vrot.slane %v1049, %v1062
        %v1064 = vcombine.high %v1056, %v1056
        %v1065 = vcombine.high %v1063, %v1063
        %v1067 = vunpack.c.l.s4 1966171168
        %v1068 = vunpack.c.0.s8 %v1067
        %v1069 = vlaneseq
        %v1070 = vshrl.u32 %v1069, 7
        %v1071 = vsub.s32 %v1068, %v1070
        %v1072 = vrot.slane %v1056, %v1071
        %v1074 = vunpack.c.l.s4 1966171168
        %v1075 = vunpack.c.0.s8 %v1074
        %v1076 = vlaneseq
        %v1077 = vshrl.u32 %v1076, 7
        %v1078 = vsub.s32 %v1075, %v1077
        %v1079 = vrot.slane %v1063, %v1078
        %v1081 = vunpack.c.l.s4 1966171168
        %v1082 = vunpack.c.0.s8 %v1081
        %v1083 = vlaneseq
        %v1084 = vshrl.u32 %v1083, 7
        %v1085 = vsub.s32 %v1082, %v1084
        %v1086 = vrot.slane %v1064, %v1085
        %v1088 = vunpack.c.l.s4 1966171168
        %v1089 = vunpack.c.0.s8 %v1088
        %v1090 = vlaneseq
        %v1091 = vshrl.u32 %v1090, 7
        %v1092 = vsub.s32 %v1089, %v1091
        %v1093 = vrot.slane %v1065, %v1092
        %v1094 = vcombine.high %v1072, %v1072
        %v1095 = vcombine.high %v1079, %v1079
        %v1096 = vcombine.high %v1086, %v1086
        %v1097 = vcombine.high %v1093, %v1093
        %v1098 = vcombine.high %v690, %v690
        %v1100 = vunpack.c.l.s4 1966171168
        %v1101 = vunpack.c.0.s8 %v1100
        %v1102 = vlaneseq
        %v1103 = vshrl.u32 %v1102, 7
        %v1104 = vsub.s32 %v1101, %v1103
        %v1105 = vrot.slane %v690, %v1104
        %v1107 = vunpack.c.l.s4 1966171168
        %v1108 = vunpack.c.0.s8 %v1107
        %v1109 = vlaneseq
        %v1110 = vshrl.u32 %v1109, 7
        %v1111 = vsub.s32 %v1108, %v1110
        %v1112 = vrot.slane %v1098, %v1111
        %v1113 = vcombine.high %v1105, %v1105
        %v1114 = vcombine.high %v1112, %v1112
        %v1116 = vunpack.c.l.s4 1966171168
        %v1117 = vunpack.c.0.s8 %v1116
        %v1118 = vlaneseq
        %v1119 = vshrl.u32 %v1118, 7
        %v1120 = vsub.s32 %v1117, %v1119
        %v1121 = vrot.slane %v1105, %v1120
        %v1123 = vunpack.c.l.s4 1966171168
        %v1124 = vunpack.c.0.s8 %v1123
        %v1125 = vlaneseq
        %v1126 = vshrl.u32 %v1125, 7
        %v1127 = vsub.s32 %v1124, %v1126
        %v1128 = vrot.slane %v1112, %v1127
        %v1130 = vunpack.c.l.s4 1966171168
        %v1131 = vunpack.c.0.s8 %v1130
        %v1132 = vlaneseq
        %v1133 = vshrl.u32 %v1132, 7
        %v1134 = vsub.s32 %v1131, %v1133
        %v1135 = vrot.slane %v1113, %v1134
        %v1137 = vunpack.c.l.s4 1966171168
        %v1138 = vunpack.c.0.s8 %v1137
        %v1139 = vlaneseq
        %v1140 = vshrl.u32 %v1139, 7
        %v1141 = vsub.s32 %v1138, %v1140
        %v1142 = vrot.slane %v1114, %v1141
        %v1143 = vcombine.high %v1121, %v1121
        %v1144 = vcombine.high %v1128, %v1128
        %v1145 = vcombine.high %v1135, %v1135
        %v1146 = vcombine.high %v1142, %v1142
        %v1147 = vcombine.high %v691, %v691
        %v1149 = vunpack.c.l.s4 1966171168
        %v1150 = vunpack.c.0.s8 %v1149
        %v1151 = vlaneseq
        %v1152 = vshrl.u32 %v1151, 7
        %v1153 = vsub.s32 %v1150, %v1152
        %v1154 = vrot.slane %v691, %v1153
        %v1156 = vunpack.c.l.s4 1966171168
        %v1157 = vunpack.c.0.s8 %v1156
        %v1158 = vlaneseq
        %v1159 = vshrl.u32 %v1158, 7
        %v1160 = vsub.s32 %v1157, %v1159
        %v1161 = vrot.slane %v1147, %v1160
        %v1162 = vcombine.high %v1154, %v1154
        %v1163 = vcombine.high %v1161, %v1161
        %v1165 = vunpack.c.l.s4 1966171168
        %v1166 = vunpack.c.0.s8 %v1165
        %v1167 = vlaneseq
        %v1168 = vshrl.u32 %v1167, 7
        %v1169 = vsub.s32 %v1166, %v1168
        %v1170 = vrot.slane %v1154, %v1169
        %v1172 = vunpack.c.l.s4 1966171168
        %v1173 = vunpack.c.0.s8 %v1172
        %v1174 = vlaneseq
        %v1175 = vshrl.u32 %v1174, 7
        %v1176 = vsub.s32 %v1173, %v1175
        %v1177 = vrot.slane %v1161, %v1176
        %v1179 = vunpack.c.l.s4 1966171168
        %v1180 = vunpack.c.0.s8 %v1179
        %v1181 = vlaneseq
        %v1182 = vshrl.u32 %v1181, 7
        %v1183 = vsub.s32 %v1180, %v1182
        %v1184 = vrot.slane %v1162, %v1183
        %v1186 = vunpack.c.l.s4 1966171168
        %v1187 = vunpack.c.0.s8 %v1186
        %v1188 = vlaneseq
        %v1189 = vshrl.u32 %v1188, 7
        %v1190 = vsub.s32 %v1187, %v1189
        %v1191 = vrot.slane %v1163, %v1190
        %v1192 = vcombine.high %v1170, %v1170
        %v1193 = vcombine.high %v1177, %v1177
        %v1194 = vcombine.high %v1184, %v1184
        %v1195 = vcombine.high %v1191, %v1191
        %v1196 = vcombine.high %v692, %v692
        %v1198 = vunpack.c.l.s4 1966171168
        %v1199 = vunpack.c.0.s8 %v1198
        %v1200 = vlaneseq
        %v1201 = vshrl.u32 %v1200, 7
        %v1202 = vsub.s32 %v1199, %v1201
        %v1203 = vrot.slane %v692, %v1202
        %v1205 = vunpack.c.l.s4 1966171168
        %v1206 = vunpack.c.0.s8 %v1205
        %v1207 = vlaneseq
        %v1208 = vshrl.u32 %v1207, 7
        %v1209 = vsub.s32 %v1206, %v1208
        %v1210 = vrot.slane %v1196, %v1209
        %v1211 = vcombine.high %v1203, %v1203
        %v1212 = vcombine.high %v1210, %v1210
        %v1214 = vunpack.c.l.s4 1966171168
        %v1215 = vunpack.c.0.s8 %v1214
        %v1216 = vlaneseq
        %v1217 = vshrl.u32 %v1216, 7
        %v1218 = vsub.s32 %v1215, %v1217
        %v1219 = vrot.slane %v1203, %v1218
        %v1221 = vunpack.c.l.s4 1966171168
        %v1222 = vunpack.c.0.s8 %v1221
        %v1223 = vlaneseq
        %v1224 = vshrl.u32 %v1223, 7
        %v1225 = vsub.s32 %v1222, %v1224
        %v1226 = vrot.slane %v1210, %v1225
        %v1228 = vunpack.c.l.s4 1966171168
        %v1229 = vunpack.c.0.s8 %v1228
        %v1230 = vlaneseq
        %v1231 = vshrl.u32 %v1230, 7
        %v1232 = vsub.s32 %v1229, %v1231
        %v1233 = vrot.slane %v1211, %v1232
        %v1235 = vunpack.c.l.s4 1966171168
        %v1236 = vunpack.c.0.s8 %v1235
        %v1237 = vlaneseq
        %v1238 = vshrl.u32 %v1237, 7
        %v1239 = vsub.s32 %v1236, %v1238
        %v1240 = vrot.slane %v1212, %v1239
        %v1241 = vcombine.high %v1219, %v1219
        %v1242 = vcombine.high %v1226, %v1226
        %v1243 = vcombine.high %v1233, %v1233
        %v1244 = vcombine.high %v1240, %v1240
        %v1245 = vcombine.high %v693, %v693
        %v1247 = vunpack.c.l.s4 1966171168
        %v1248 = vunpack.c.0.s8 %v1247
        %v1249 = vlaneseq
        %v1250 = vshrl.u32 %v1249, 7
        %v1251 = vsub.s32 %v1248, %v1250
        %v1252 = vrot.slane %v693, %v1251
        %v1254 = vunpack.c.l.s4 1966171168
        %v1255 = vunpack.c.0.s8 %v1254
        %v1256 = vlaneseq
        %v1257 = vshrl.u32 %v1256, 7
        %v1258 = vsub.s32 %v1255, %v1257
        %v1259 = vrot.slane %v1245, %v1258
        %v1260 = vcombine.high %v1252, %v1252
        %v1261 = vcombine.high %v1259, %v1259
        %v1263 = vunpack.c.l.s4 1966171168
        %v1264 = vunpack.c.0.s8 %v1263
        %v1265 = vlaneseq
        %v1266 = vshrl.u32 %v1265, 7
        %v1267 = vsub.s32 %v1264, %v1266
        %v1268 = vrot.slane %v1252, %v1267
        %v1270 = vunpack.c.l.s4 1966171168
        %v1271 = vunpack.c.0.s8 %v1270
        %v1272 = vlaneseq
        %v1273 = vshrl.u32 %v1272, 7
        %v1274 = vsub.s32 %v1271, %v1273
        %v1275 = vrot.slane %v1259, %v1274
        %v1277 = vunpack.c.l.s4 1966171168
        %v1278 = vunpack.c.0.s8 %v1277
        %v1279 = vlaneseq
        %v1280 = vshrl.u32 %v1279, 7
        %v1281 = vsub.s32 %v1278, %v1280
        %v1282 = vrot.slane %v1260, %v1281
        %v1284 = vunpack.c.l.s4 1966171168
        %v1285 = vunpack.c.0.s8 %v1284
        %v1286 = vlaneseq
        %v1287 = vshrl.u32 %v1286, 7
        %v1288 = vsub.s32 %v1285, %v1287
        %v1289 = vrot.slane %v1261, %v1288
        %v1290 = vcombine.high %v1268, %v1268
        %v1291 = vcombine.high %v1275, %v1275
        %v1292 = vcombine.high %v1282, %v1282
        %v1293 = vcombine.high %v1289, %v1289
        %v1294 = vcombine.low %v729, %v743
        %v1296 = vunpack.c.l.s4 1966171168
        %v1297 = vunpack.c.0.s8 %v1296
        %v1298 = vlaneseq
        %v1299 = vshrl.u32 %v1298, 7
        %v1300 = vsub.s32 %v1297, %v1299
        %v1301 = vrot.slane %v1294, %v1300
        %v1303 = vunpack.c.l.s4 1966171168
        %v1304 = vunpack.c.0.s8 %v1303
        %v1305 = vlaneseq
        %v1306 = vshrl.u32 %v1305, 7
        %v1307 = vsub.s32 %v1304, %v1306
        %v1308 = vrot.slane %v751, %v1307
        %v1309 = vcombine.low %v1301, %v1308
        %v1311 = vunpack.c.l.s4 1966171168
        %v1312 = vunpack.c.0.s8 %v1311
        %v1313 = vlaneseq
        %v1314 = vshrl.u32 %v1313, 7
        %v1315 = vsub.s32 %v1312, %v1314
        %v1316 = vrot.slane %v1309, %v1315
        %v1317 = vcombine.low %v753, %v736
        %v1319 = vunpack.c.l.s4 1966171168
        %v1320 = vunpack.c.0.s8 %v1319
        %v1321 = vlaneseq
        %v1322 = vshrl.u32 %v1321, 7
        %v1323 = vsub.s32 %v1320, %v1322
        %v1324 = vrot.slane %v1317, %v1323
        %v1326 = vunpack.c.l.s4 1966171168
        %v1327 = vunpack.c.0.s8 %v1326
        %v1328 = vlaneseq
        %v1329 = vshrl.u32 %v1328, 7
        %v1330 = vsub.s32 %v1327, %v1329
        %v1331 = vrot.slane %v750, %v1330
        %v1332 = vcombine.low %v1324, %v1331
        %v1334 = vunpack.c.l.s4 1966171168
        %v1335 = vunpack.c.0.s8 %v1334
        %v1336 = vlaneseq
        %v1337 = vshrl.u32 %v1336, 7
        %v1338 = vsub.s32 %v1335, %v1337
        %v1339 = vrot.slane %v1332, %v1338
        %v1340 = vcombine.low %v752, %v754
        %v1342 = vunpack.c.l.s4 1966171168
        %v1343 = vunpack.c.0.s8 %v1342
        %v1344 = vlaneseq
        %v1345 = vshrl.u32 %v1344, 7
        %v1346 = vsub.s32 %v1343, %v1345
        %v1347 = vrot.slane %v1340, %v1346
        %v1349 = vunpack.c.l.s4 1966171168
        %v1350 = vunpack.c.0.s8 %v1349
        %v1351 = vlaneseq
        %v1352 = vshrl.u32 %v1351, 7
        %v1353 = vsub.s32 %v1350, %v1352
        %v1354 = vrot.slane %v778, %v1353
        %v1355 = vcombine.low %v1347, %v1354
        %v1357 = vunpack.c.l.s4 1966171168
        %v1358 = vunpack.c.0.s8 %v1357
        %v1359 = vlaneseq
        %v1360 = vshrl.u32 %v1359, 7
        %v1361 = vsub.s32 %v1358, %v1360
        %v1362 = vrot.slane %v1355, %v1361
        %v1363 = vcombine.low %v792, %v800
        %v1365 = vunpack.c.l.s4 1966171168
        %v1366 = vunpack.c.0.s8 %v1365
        %v1367 = vlaneseq
        %v1368 = vshrl.u32 %v1367, 7
        %v1369 = vsub.s32 %v1366, %v1368
        %v1370 = vrot.slane %v1363, %v1369
        %v1372 = vunpack.c.l.s4 1966171168
        %v1373 = vunpack.c.0.s8 %v1372
        %v1374 = vlaneseq
        %v1375 = vshrl.u32 %v1374, 7
        %v1376 = vsub.s32 %v1373, %v1375
        %v1377 = vrot.slane %v802, %v1376
        %v1378 = vcombine.low %v1370, %v1377
        %v1380 = vunpack.c.l.s4 1966171168
        %v1381 = vunpack.c.0.s8 %v1380
        %v1382 = vlaneseq
        %v1383 = vshrl.u32 %v1382, 7
        %v1384 = vsub.s32 %v1381, %v1383
        %v1385 = vrot.slane %v1378, %v1384
        %v1386 = vcombine.low %v785, %v799
        %v1388 = vunpack.c.l.s4 1966171168
        %v1389 = vunpack.c.0.s8 %v1388
        %v1390 = vlaneseq
        %v1391 = vshrl.u32 %v1390, 7
        %v1392 = vsub.s32 %v1389, %v1391
        %v1393 = vrot.slane %v1386, %v1392
        %v1395 = vunpack.c.l.s4 1966171168
        %v1396 = vunpack.c.0.s8 %v1395
        %v1397 = vlaneseq
        %v1398 = vshrl.u32 %v1397, 7
        %v1399 = vsub.s32 %v1396, %v1398
        %v1400 = vrot.slane %v801, %v1399
        %v1401 = vcombine.low %v1393, %v1400
        %v1403 = vunpack.c.l.s4 1966171168
        %v1404 = vunpack.c.0.s8 %v1403
        %v1405 = vlaneseq
        %v1406 = vshrl.u32 %v1405, 7
        %v1407 = vsub.s32 %v1404, %v1406
        %v1408 = vrot.slane %v1401, %v1407
        %v1409 = vcombine.low %v803, %v827
        %v1411 = vunpack.c.l.s4 1966171168
        %v1412 = vunpack.c.0.s8 %v1411
        %v1413 = vlaneseq
        %v1414 = vshrl.u32 %v1413, 7
        %v1415 = vsub.s32 %v1412, %v1414
        %v1416 = vrot.slane %v1409, %v1415
        %v1418 = vunpack.c.l.s4 1966171168
        %v1419 = vunpack.c.0.s8 %v1418
        %v1420 = vlaneseq
        %v1421 = vshrl.u32 %v1420, 7
        %v1422 = vsub.s32 %v1419, %v1421
        %v1423 = vrot.slane %v841, %v1422
        %v1424 = vcombine.low %v1416, %v1423
        %v1426 = vunpack.c.l.s4 1966171168
        %v1427 = vunpack.c.0.s8 %v1426
        %v1428 = vlaneseq
        %v1429 = vshrl.u32 %v1428, 7
        %v1430 = vsub.s32 %v1427, %v1429
        %v1431 = vrot.slane %v1424, %v1430
        %v1432 = vcombine.low %v849, %v851
        %v1434 = vunpack.c.l.s4 1966171168
        %v1435 = vunpack.c.0.s8 %v1434
        %v1436 = vlaneseq
        %v1437 = vshrl.u32 %v1436, 7
        %v1438 = vsub.s32 %v1435, %v1437
        %v1439 = vrot.slane %v1432, %v1438
        %v1441 = vunpack.c.l.s4 1966171168
        %v1442 = vunpack.c.0.s8 %v1441
        %v1443 = vlaneseq
        %v1444 = vshrl.u32 %v1443, 7
        %v1445 = vsub.s32 %v1442, %v1444
        %v1446 = vrot.slane %v834, %v1445
        %v1447 = vcombine.low %v1439, %v1446
        %v1449 = vunpack.c.l.s4 1966171168
        %v1450 = vunpack.c.0.s8 %v1449
        %v1451 = vlaneseq
        %v1452 = vshrl.u32 %v1451, 7
        %v1453 = vsub.s32 %v1450, %v1452
        %v1454 = vrot.slane %v1447, %v1453
        %v1455 = vcombine.low %v848, %v850
        %v1457 = vunpack.c.l.s4 1966171168
        %v1458 = vunpack.c.0.s8 %v1457
        %v1459 = vlaneseq
        %v1460 = vshrl.u32 %v1459, 7
        %v1461 = vsub.s32 %v1458, %v1460
        %v1462 = vrot.slane %v1455, %v1461
        %v1464 = vunpack.c.l.s4 1966171168
        %v1465 = vunpack.c.0.s8 %v1464
        %v1466 = vlaneseq
        %v1467 = vshrl.u32 %v1466, 7
        %v1468 = vsub.s32 %v1465, %v1467
        %v1469 = vrot.slane %v852, %v1468
        %v1470 = vcombine.low %v1462, %v1469
        %v1472 = vunpack.c.l.s4 1966171168
        %v1473 = vunpack.c.0.s8 %v1472
        %v1474 = vlaneseq
        %v1475 = vshrl.u32 %v1474, 7
        %v1476 = vsub.s32 %v1473, %v1475
        %v1477 = vrot.slane %v1470, %v1476
        %v1478 = vcombine.low %v876, %v890
        %v1480 = vunpack.c.l.s4 1966171168
        %v1481 = vunpack.c.0.s8 %v1480
        %v1482 = vlaneseq
        %v1483 = vshrl.u32 %v1482, 7
        %v1484 = vsub.s32 %v1481, %v1483
        %v1485 = vrot.slane %v1478, %v1484
        %v1487 = vunpack.c.l.s4 1966171168
        %v1488 = vunpack.c.0.s8 %v1487
        %v1489 = vlaneseq
        %v1490 = vshrl.u32 %v1489, 7
        %v1491 = vsub.s32 %v1488, %v1490
        %v1492 = vrot.slane %v898, %v1491
        %v1493 = vcombine.low %v1485, %v1492
        %v1495 = vunpack.c.l.s4 1966171168
        %v1496 = vunpack.c.0.s8 %v1495
        %v1497 = vlaneseq
        %v1498 = vshrl.u32 %v1497, 7
        %v1499 = vsub.s32 %v1496, %v1498
        %v1500 = vrot.slane %v1493, %v1499
        %v1501 = vcombine.low %v900, %v883
        %v1503 = vunpack.c.l.s4 1966171168
        %v1504 = vunpack.c.0.s8 %v1503
        %v1505 = vlaneseq
        %v1506 = vshrl.u32 %v1505, 7
        %v1507 = vsub.s32 %v1504, %v1506
        %v1508 = vrot.slane %v1501, %v1507
        %v1510 = vunpack.c.l.s4 1966171168
        %v1511 = vunpack.c.0.s8 %v1510
        %v1512 = vlaneseq
        %v1513 = vshrl.u32 %v1512, 7
        %v1514 = vsub.s32 %v1511, %v1513
        %v1515 = vrot.slane %v897, %v1514
        %v1516 = vcombine.low %v1508, %v1515
        %v1518 = vunpack.c.l.s4 1966171168
        %v1519 = vunpack.c.0.s8 %v1518
        %v1520 = vlaneseq
        %v1521 = vshrl.u32 %v1520, 7
        %v1522 = vsub.s32 %v1519, %v1521
        %v1523 = vrot.slane %v1516, %v1522
        %v1524 = vcombine.low %v899, %v901
        %v1526 = vunpack.c.l.s4 1966171168
        %v1527 = vunpack.c.0.s8 %v1526
        %v1528 = vlaneseq
        %v1529 = vshrl.u32 %v1528, 7
        %v1530 = vsub.s32 %v1527, %v1529
        %v1531 = vrot.slane %v1524, %v1530
        %v1533 = vunpack.c.l.s4 1966171168
        %v1534 = vunpack.c.0.s8 %v1533
        %v1535 = vlaneseq
        %v1536 = vshrl.u32 %v1535, 7
        %v1537 = vsub.s32 %v1534, %v1536
        %v1538 = vrot.slane %v925, %v1537
        %v1539 = vcombine.low %v1531, %v1538
        %v1541 = vunpack.c.l.s4 1966171168
        %v1542 = vunpack.c.0.s8 %v1541
        %v1543 = vlaneseq
        %v1544 = vshrl.u32 %v1543, 7
        %v1545 = vsub.s32 %v1542, %v1544
        %v1546 = vrot.slane %v1539, %v1545
        %v1547 = vcombine.low %v939, %v947
        %v1549 = vunpack.c.l.s4 1966171168
        %v1550 = vunpack.c.0.s8 %v1549
        %v1551 = vlaneseq
        %v1552 = vshrl.u32 %v1551, 7
        %v1553 = vsub.s32 %v1550, %v1552
        %v1554 = vrot.slane %v1547, %v1553
        %v1556 = vunpack.c.l.s4 1966171168
        %v1557 = vunpack.c.0.s8 %v1556
        %v1558 = vlaneseq
        %v1559 = vshrl.u32 %v1558, 7
        %v1560 = vsub.s32 %v1557, %v1559
        %v1561 = vrot.slane %v949, %v1560
        %v1562 = vcombine.low %v1554, %v1561
        %v1564 = vunpack.c.l.s4 1966171168
        %v1565 = vunpack.c.0.s8 %v1564
        %v1566 = vlaneseq
        %v1567 = vshrl.u32 %v1566, 7
        %v1568 = vsub.s32 %v1565, %v1567
        %v1569 = vrot.slane %v1562, %v1568
        %v1570 = vcombine.low %v932, %v946
        %v1572 = vunpack.c.l.s4 1966171168
        %v1573 = vunpack.c.0.s8 %v1572
        %v1574 = vlaneseq
        %v1575 = vshrl.u32 %v1574, 7
        %v1576 = vsub.s32 %v1573, %v1575
        %v1577 = vrot.slane %v1570, %v1576
        %v1579 = vunpack.c.l.s4 1966171168
        %v1580 = vunpack.c.0.s8 %v1579
        %v1581 = vlaneseq
        %v1582 = vshrl.u32 %v1581, 7
        %v1583 = vsub.s32 %v1580, %v1582
        %v1584 = vrot.slane %v948, %v1583
        %v1585 = vcombine.low %v1577, %v1584
        %v1587 = vunpack.c.l.s4 1966171168
        %v1588 = vunpack.c.0.s8 %v1587
        %v1589 = vlaneseq
        %v1590 = vshrl.u32 %v1589, 7
        %v1591 = vsub.s32 %v1588, %v1590
        %v1592 = vrot.slane %v1585, %v1591
        %v1593 = vcombine.low %v950, %v974
        %v1595 = vunpack.c.l.s4 1966171168
        %v1596 = vunpack.c.0.s8 %v1595
        %v1597 = vlaneseq
        %v1598 = vshrl.u32 %v1597, 7
        %v1599 = vsub.s32 %v1596, %v1598
        %v1600 = vrot.slane %v1593, %v1599
        %v1602 = vunpack.c.l.s4 1966171168
        %v1603 = vunpack.c.0.s8 %v1602
        %v1604 = vlaneseq
        %v1605 = vshrl.u32 %v1604, 7
        %v1606 = vsub.s32 %v1603, %v1605
        %v1607 = vrot.slane %v988, %v1606
        %v1608 = vcombine.low %v1600, %v1607
        %v1610 = vunpack.c.l.s4 1966171168
        %v1611 = vunpack.c.0.s8 %v1610
        %v1612 = vlaneseq
        %v1613 = vshrl.u32 %v1612, 7
        %v1614 = vsub.s32 %v1611, %v1613
        %v1615 = vrot.slane %v1608, %v1614
        %v1616 = vcombine.low %v996, %v998
        %v1618 = vunpack.c.l.s4 1966171168
        %v1619 = vunpack.c.0.s8 %v1618
        %v1620 = vlaneseq
        %v1621 = vshrl.u32 %v1620, 7
        %v1622 = vsub.s32 %v1619, %v1621
        %v1623 = vrot.slane %v1616, %v1622
        %v1625 = vunpack.c.l.s4 1966171168
        %v1626 = vunpack.c.0.s8 %v1625
        %v1627 = vlaneseq
        %v1628 = vshrl.u32 %v1627, 7
        %v1629 = vsub.s32 %v1626, %v1628
        %v1630 = vrot.slane %v981, %v1629
        %v1631 = vcombine.low %v1623, %v1630
        %v1633 = vunpack.c.l.s4 1966171168
        %v1634 = vunpack.c.0.s8 %v1633
        %v1635 = vlaneseq
        %v1636 = vshrl.u32 %v1635, 7
        %v1637 = vsub.s32 %v1634, %v1636
        %v1638 = vrot.slane %v1631, %v1637
        %v1639 = vcombine.low %v995, %v997
        %v1641 = vunpack.c.l.s4 1966171168
        %v1642 = vunpack.c.0.s8 %v1641
        %v1643 = vlaneseq
        %v1644 = vshrl.u32 %v1643, 7
        %v1645 = vsub.s32 %v1642, %v1644
        %v1646 = vrot.slane %v1639, %v1645
        %v1648 = vunpack.c.l.s4 1966171168
        %v1649 = vunpack.c.0.s8 %v1648
        %v1650 = vlaneseq
        %v1651 = vshrl.u32 %v1650, 7
        %v1652 = vsub.s32 %v1649, %v1651
        %v1653 = vrot.slane %v999, %v1652
        %v1654 = vcombine.low %v1646, %v1653
        %v1656 = vunpack.c.l.s4 1966171168
        %v1657 = vunpack.c.0.s8 %v1656
        %v1658 = vlaneseq
        %v1659 = vshrl.u32 %v1658, 7
        %v1660 = vsub.s32 %v1657, %v1659
        %v1661 = vrot.slane %v1654, %v1660
        %v1662 = vcombine.low %v1023, %v1037
        %v1664 = vunpack.c.l.s4 1966171168
        %v1665 = vunpack.c.0.s8 %v1664
        %v1666 = vlaneseq
        %v1667 = vshrl.u32 %v1666, 7
        %v1668 = vsub.s32 %v1665, %v1667
        %v1669 = vrot.slane %v1662, %v1668
        %v1671 = vunpack.c.l.s4 1966171168
        %v1672 = vunpack.c.0.s8 %v1671
        %v1673 = vlaneseq
        %v1674 = vshrl.u32 %v1673, 7
        %v1675 = vsub.s32 %v1672, %v1674
        %v1676 = vrot.slane %v1045, %v1675
        %v1677 = vcombine.low %v1669, %v1676
        %v1679 = vunpack.c.l.s4 1966171168
        %v1680 = vunpack.c.0.s8 %v1679
        %v1681 = vlaneseq
        %v1682 = vshrl.u32 %v1681, 7
        %v1683 = vsub.s32 %v1680, %v1682
        %v1684 = vrot.slane %v1677, %v1683
        %v1685 = vcombine.low %v1047, %v1030
        %v1687 = vunpack.c.l.s4 1966171168
        %v1688 = vunpack.c.0.s8 %v1687
        %v1689 = vlaneseq
        %v1690 = vshrl.u32 %v1689, 7
        %v1691 = vsub.s32 %v1688, %v1690
        %v1692 = vrot.slane %v1685, %v1691
        %v1694 = vunpack.c.l.s4 1966171168
        %v1695 = vunpack.c.0.s8 %v1694
        %v1696 = vlaneseq
        %v1697 = vshrl.u32 %v1696, 7
        %v1698 = vsub.s32 %v1695, %v1697
        %v1699 = vrot.slane %v1044, %v1698
        %v1700 = vcombine.low %v1692, %v1699
        %v1702 = vunpack.c.l.s4 1966171168
        %v1703 = vunpack.c.0.s8 %v1702
        %v1704 = vlaneseq
        %v1705 = vshrl.u32 %v1704, 7
        %v1706 = vsub.s32 %v1703, %v1705
        %v1707 = vrot.slane %v1700, %v1706
        %v1708 = vcombine.low %v1046, %v1048
        %v1710 = vunpack.c.l.s4 1966171168
        %v1711 = vunpack.c.0.s8 %v1710
        %v1712 = vlaneseq
        %v1713 = vshrl.u32 %v1712, 7
        %v1714 = vsub.s32 %v1711, %v1713
        %v1715 = vrot.slane %v1708, %v1714
        %v1717 = vunpack.c.l.s4 1966171168
        %v1718 = vunpack.c.0.s8 %v1717
        %v1719 = vlaneseq
        %v1720 = vshrl.u32 %v1719, 7
        %v1721 = vsub.s32 %v1718, %v1720
        %v1722 = vrot.slane %v1072, %v1721
        %v1723 = vcombine.low %v1715, %v1722
        %v1725 = vunpack.c.l.s4 1966171168
        %v1726 = vunpack.c.0.s8 %v1725
        %v1727 = vlaneseq
        %v1728 = vshrl.u32 %v1727, 7
        %v1729 = vsub.s32 %v1726, %v1728
        %v1730 = vrot.slane %v1723, %v1729
        %v1731 = vcombine.low %v1086, %v1094
        %v1733 = vunpack.c.l.s4 1966171168
        %v1734 = vunpack.c.0.s8 %v1733
        %v1735 = vlaneseq
        %v1736 = vshrl.u32 %v1735, 7
        %v1737 = vsub.s32 %v1734, %v1736
        %v1738 = vrot.slane %v1731, %v1737
        %v1740 = vunpack.c.l.s4 1966171168
        %v1741 = vunpack.c.0.s8 %v1740
        %v1742 = vlaneseq
        %v1743 = vshrl.u32 %v1742, 7
        %v1744 = vsub.s32 %v1741, %v1743
        %v1745 = vrot.slane %v1096, %v1744
        %v1746 = vcombine.low %v1738, %v1745
        %v1748 = vunpack.c.l.s4 1966171168
        %v1749 = vunpack.c.0.s8 %v1748
        %v1750 = vlaneseq
        %v1751 = vshrl.u32 %v1750, 7
        %v1752 = vsub.s32 %v1749, %v1751
        %v1753 = vrot.slane %v1746, %v1752
        %v1754 = vcombine.low %v1079, %v1093
        %v1756 = vunpack.c.l.s4 1966171168
        %v1757 = vunpack.c.0.s8 %v1756
        %v1758 = vlaneseq
        %v1759 = vshrl.u32 %v1758, 7
        %v1760 = vsub.s32 %v1757, %v1759
        %v1761 = vrot.slane %v1754, %v1760
        %v1763 = vunpack.c.l.s4 1966171168
        %v1764 = vunpack.c.0.s8 %v1763
        %v1765 = vlaneseq
        %v1766 = vshrl.u32 %v1765, 7
        %v1767 = vsub.s32 %v1764, %v1766
        %v1768 = vrot.slane %v1095, %v1767
        %v1769 = vcombine.low %v1761, %v1768
        %v1771 = vunpack.c.l.s4 1966171168
        %v1772 = vunpack.c.0.s8 %v1771
        %v1773 = vlaneseq
        %v1774 = vshrl.u32 %v1773, 7
        %v1775 = vsub.s32 %v1772, %v1774
        %v1776 = vrot.slane %v1769, %v1775
        %v1777 = vcombine.low %v1097, %v1121
        %v1779 = vunpack.c.l.s4 1966171168
        %v1780 = vunpack.c.0.s8 %v1779
        %v1781 = vlaneseq
        %v1782 = vshrl.u32 %v1781, 7
        %v1783 = vsub.s32 %v1780, %v1782
        %v1784 = vrot.slane %v1777, %v1783
        %v1786 = vunpack.c.l.s4 1966171168
        %v1787 = vunpack.c.0.s8 %v1786
        %v1788 = vlaneseq
        %v1789 = vshrl.u32 %v1788, 7
        %v1790 = vsub.s32 %v1787, %v1789
        %v1791 = vrot.slane %v1135, %v1790
        %v1792 = vcombine.low %v1784, %v1791
        %v1794 = vunpack.c.l.s4 1966171168
        %v1795 = vunpack.c.0.s8 %v1794
        %v1796 = vlaneseq
        %v1797 = vshrl.u32 %v1796, 7
        %v1798 = vsub.s32 %v1795, %v1797
        %v1799 = vrot.slane %v1792, %v1798
        %v1800 = vcombine.low %v1143, %v1145
        %v1802 = vunpack.c.l.s4 1966171168
        %v1803 = vunpack.c.0.s8 %v1802
        %v1804 = vlaneseq
        %v1805 = vshrl.u32 %v1804, 7
        %v1806 = vsub.s32 %v1803, %v1805
        %v1807 = vrot.slane %v1800, %v1806
        %v1809 = vunpack.c.l.s4 1966171168
        %v1810 = vunpack.c.0.s8 %v1809
        %v1811 = vlaneseq
        %v1812 = vshrl.u32 %v1811, 7
        %v1813 = vsub.s32 %v1810, %v1812
        %v1814 = vrot.slane %v1128, %v1813
        %v1815 = vcombine.low %v1807, %v1814
        %v1817 = vunpack.c.l.s4 1966171168
        %v1818 = vunpack.c.0.s8 %v1817
        %v1819 = vlaneseq
        %v1820 = vshrl.u32 %v1819, 7
        %v1821 = vsub.s32 %v1818, %v1820
        %v1822 = vrot.slane %v1815, %v1821
        %v1823 = vcombine.low %v1142, %v1144
        %v1825 = vunpack.c.l.s4 1966171168
        %v1826 = vunpack.c.0.s8 %v1825
        %v1827 = vlaneseq
        %v1828 = vshrl.u32 %v1827, 7
        %v1829 = vsub.s32 %v1826, %v1828
        %v1830 = vrot.slane %v1823, %v1829
        %v1832 = vunpack.c.l.s4 1966171168
        %v1833 = vunpack.c.0.s8 %v1832
        %v1834 = vlaneseq
        %v1835 = vshrl.u32 %v1834, 7
        %v1836 = vsub.s32 %v1833, %v1835
        %v1837 = vrot.slane %v1146, %v1836
        %v1838 = vcombine.low %v1830, %v1837
        %v1840 = vunpack.c.l.s4 1966171168
        %v1841 = vunpack.c.0.s8 %v1840
        %v1842 = vlaneseq
        %v1843 = vshrl.u32 %v1842, 7
        %v1844 = vsub.s32 %v1841, %v1843
        %v1845 = vrot.slane %v1838, %v1844
        %v1846 = vcombine.low %v1170, %v1184
        %v1848 = vunpack.c.l.s4 1966171168
        %v1849 = vunpack.c.0.s8 %v1848
        %v1850 = vlaneseq
        %v1851 = vshrl.u32 %v1850, 7
        %v1852 = vsub.s32 %v1849, %v1851
        %v1853 = vrot.slane %v1846, %v1852
        %v1855 = vunpack.c.l.s4 1966171168
        %v1856 = vunpack.c.0.s8 %v1855
        %v1857 = vlaneseq
        %v1858 = vshrl.u32 %v1857, 7
        %v1859 = vsub.s32 %v1856, %v1858
        %v1860 = vrot.slane %v1192, %v1859
        %v1861 = vcombine.low %v1853, %v1860
        %v1863 = vunpack.c.l.s4 1966171168
        %v1864 = vunpack.c.0.s8 %v1863
        %v1865 = vlaneseq
        %v1866 = vshrl.u32 %v1865, 7
        %v1867 = vsub.s32 %v1864, %v1866
        %v1868 = vrot.slane %v1861, %v1867
        %v1869 = vcombine.low %v1194, %v1177
        %v1871 = vunpack.c.l.s4 1966171168
        %v1872 = vunpack.c.0.s8 %v1871
        %v1873 = vlaneseq
        %v1874 = vshrl.u32 %v1873, 7
        %v1875 = vsub.s32 %v1872, %v1874
        %v1876 = vrot.slane %v1869, %v1875
        %v1878 = vunpack.c.l.s4 1966171168
        %v1879 = vunpack.c.0.s8 %v1878
        %v1880 = vlaneseq
        %v1881 = vshrl.u32 %v1880, 7
        %v1882 = vsub.s32 %v1879, %v1881
        %v1883 = vrot.slane %v1191, %v1882
        %v1884 = vcombine.low %v1876, %v1883
        %v1886 = vunpack.c.l.s4 1966171168
        %v1887 = vunpack.c.0.s8 %v1886
        %v1888 = vlaneseq
        %v1889 = vshrl.u32 %v1888, 7
        %v1890 = vsub.s32 %v1887, %v1889
        %v1891 = vrot.slane %v1884, %v1890
        %v1892 = vcombine.low %v1193, %v1195
        %v1894 = vunpack.c.l.s4 1966171168
        %v1895 = vunpack.c.0.s8 %v1894
        %v1896 = vlaneseq
        %v1897 = vshrl.u32 %v1896, 7
        %v1898 = vsub.s32 %v1895, %v1897
        %v1899 = vrot.slane %v1892, %v1898
        %v1901 = vunpack.c.l.s4 1966171168
        %v1902 = vunpack.c.0.s8 %v1901
        %v1903 = vlaneseq
        %v1904 = vshrl.u32 %v1903, 7
        %v1905 = vsub.s32 %v1902, %v1904
        %v1906 = vrot.slane %v1219, %v1905
        %v1907 = vcombine.low %v1899, %v1906
        %v1909 = vunpack.c.l.s4 1966171168
        %v1910 = vunpack.c.0.s8 %v1909
        %v1911 = vlaneseq
        %v1912 = vshrl.u32 %v1911, 7
        %v1913 = vsub.s32 %v1910, %v1912
        %v1914 = vrot.slane %v1907, %v1913
        %v1915 = vcombine.low %v1233, %v1241
        %v1917 = vunpack.c.l.s4 1966171168
        %v1918 = vunpack.c.0.s8 %v1917
        %v1919 = vlaneseq
        %v1920 = vshrl.u32 %v1919, 7
        %v1921 = vsub.s32 %v1918, %v1920
        %v1922 = vrot.slane %v1915, %v1921
        %v1924 = vunpack.c.l.s4 1966171168
        %v1925 = vunpack.c.0.s8 %v1924
        %v1926 = vlaneseq
        %v1927 = vshrl.u32 %v1926, 7
        %v1928 = vsub.s32 %v1925, %v1927
        %v1929 = vrot.slane %v1243, %v1928
        %v1930 = vcombine.low %v1922, %v1929
        %v1932 = vunpack.c.l.s4 1966171168
        %v1933 = vunpack.c.0.s8 %v1932
        %v1934 = vlaneseq
        %v1935 = vshrl.u32 %v1934, 7
        %v1936 = vsub.s32 %v1933, %v1935
        %v1937 = vrot.slane %v1930, %v1936
        %v1938 = vcombine.low %v1226, %v1240
        %v1940 = vunpack.c.l.s4 1966171168
        %v1941 = vunpack.c.0.s8 %v1940
        %v1942 = vlaneseq
        %v1943 = vshrl.u32 %v1942, 7
        %v1944 = vsub.s32 %v1941, %v1943
        %v1945 = vrot.slane %v1938, %v1944
        %v1947 = vunpack.c.l.s4 1966171168
        %v1948 = vunpack.c.0.s8 %v1947
        %v1949 = vlaneseq
        %v1950 = vshrl.u32 %v1949, 7
        %v1951 = vsub.s32 %v1948, %v1950
        %v1952 = vrot.slane %v1242, %v1951
        %v1953 = vcombine.low %v1945, %v1952
        %v1955 = vunpack.c.l.s4 1966171168
        %v1956 = vunpack.c.0.s8 %v1955
        %v1957 = vlaneseq
        %v1958 = vshrl.u32 %v1957, 7
        %v1959 = vsub.s32 %v1956, %v1958
        %v1960 = vrot.slane %v1953, %v1959
        %v1961 = vcombine.low %v1244, %v1268
        %v1963 = vunpack.c.l.s4 1966171168
        %v1964 = vunpack.c.0.s8 %v1963
        %v1965 = vlaneseq
        %v1966 = vshrl.u32 %v1965, 7
        %v1967 = vsub.s32 %v1964, %v1966
        %v1968 = vrot.slane %v1961, %v1967
        %v1970 = vunpack.c.l.s4 1966171168
        %v1971 = vunpack.c.0.s8 %v1970
        %v1972 = vlaneseq
        %v1973 = vshrl.u32 %v1972, 7
        %v1974 = vsub.s32 %v1971, %v1973
        %v1975 = vrot.slane %v1282, %v1974
        %v1976 = vcombine.low %v1968, %v1975
        %v1978 = vunpack.c.l.s4 1966171168
        %v1979 = vunpack.c.0.s8 %v1978
        %v1980 = vlaneseq
        %v1981 = vshrl.u32 %v1980, 7
        %v1982 = vsub.s32 %v1979, %v1981
        %v1983 = vrot.slane %v1976, %v1982
        %v1984 = vcombine.low %v1290, %v1292
        %v1986 = vunpack.c.l.s4 1966171168
        %v1987 = vunpack.c.0.s8 %v1986
        %v1988 = vlaneseq
        %v1989 = vshrl.u32 %v1988, 7
        %v1990 = vsub.s32 %v1987, %v1989
        %v1991 = vrot.slane %v1984, %v1990
        %v1993 = vunpack.c.l.s4 1966171168
        %v1994 = vunpack.c.0.s8 %v1993
        %v1995 = vlaneseq
        %v1996 = vshrl.u32 %v1995, 7
        %v1997 = vsub.s32 %v1994, %v1996
        %v1998 = vrot.slane %v1275, %v1997
        %v1999 = vcombine.low %v1991, %v1998
        %v2001 = vunpack.c.l.s4 1966171168
        %v2002 = vunpack.c.0.s8 %v2001
        %v2003 = vlaneseq
        %v2004 = vshrl.u32 %v2003, 7
        %v2005 = vsub.s32 %v2002, %v2004
        %v2006 = vrot.slane %v1999, %v2005
        %v2007 = vcombine.low %v1289, %v1291
        %v2009 = vunpack.c.l.s4 1966171168
        %v2010 = vunpack.c.0.s8 %v2009
        %v2011 = vlaneseq
        %v2012 = vshrl.u32 %v2011, 7
        %v2013 = vsub.s32 %v2010, %v2012
        %v2014 = vrot.slane %v2007, %v2013
        %v2016 = vunpack.c.l.s4 1966171168
        %v2017 = vunpack.c.0.s8 %v2016
        %v2018 = vlaneseq
        %v2019 = vshrl.u32 %v2018, 7
        %v2020 = vsub.s32 %v2017, %v2019
        %v2021 = vrot.slane %v1293, %v2020
        %v2022 = vcombine.low %v2014, %v2021
        %v2024 = vunpack.c.l.s4 1966171168
        %v2025 = vunpack.c.0.s8 %v2024
        %v2026 = vlaneseq
        %v2027 = vshrl.u32 %v2026, 7
        %v2028 = vsub.s32 %v2025, %v2027
        %v2029 = vrot.slane %v2022, %v2028
        %vm2062 = vcmask 1042432
        %v2063 = vsel %vm2062, %v1316, -inf
        %v2064 = vrot.slane %v2063, 4
        %v2065 = vmax.f32 %v2063, %v2064
        %v2066 = vrot.slane %v2065, 2
        %v2067 = vmax.f32 %v2065, %v2066
        %v2068 = vrot.slane %v2067, 1
        %v2069 = vmax.f32 %v2067, %v2068
        %v2070 = vsel %vm2062, %v1339, -inf
        %v2071 = vrot.slane %v2070, 4
        %v2072 = vmax.f32 %v2070, %v2071
        %v2073 = vrot.slane %v2072, 2
        %v2074 = vmax.f32 %v2072, %v2073
        %v2075 = vrot.slane %v2074, 1
        %v2076 = vmax.f32 %v2074, %v2075
        %v2077 = vsel %vm2062, %v1362, -inf
        %v2078 = vrot.slane %v2077, 4
        %v2079 = vmax.f32 %v2077, %v2078
        %v2080 = vrot.slane %v2079, 2
        %v2081 = vmax.f32 %v2079, %v2080
        %v2082 = vrot.slane %v2081, 1
        %v2083 = vmax.f32 %v2081, %v2082
        %v2084 = vsel %vm2062, %v1385, -inf
        %v2085 = vrot.slane %v2084, 4
        %v2086 = vmax.f32 %v2084, %v2085
        %v2087 = vrot.slane %v2086, 2
        %v2088 = vmax.f32 %v2086, %v2087
        %v2089 = vrot.slane %v2088, 1
        %v2090 = vmax.f32 %v2088, %v2089
        %v2091 = vsel %vm2062, %v1408, -inf
        %v2092 = vrot.slane %v2091, 4
        %v2093 = vmax.f32 %v2091, %v2092
        %v2094 = vrot.slane %v2093, 2
        %v2095 = vmax.f32 %v2093, %v2094
        %v2096 = vrot.slane %v2095, 1
        %v2097 = vmax.f32 %v2095, %v2096
        %v2098 = vsel %vm2062, %v1431, -inf
        %v2099 = vrot.slane %v2098, 4
        %v2100 = vmax.f32 %v2098, %v2099
        %v2101 = vrot.slane %v2100, 2
        %v2102 = vmax.f32 %v2100, %v2101
        %v2103 = vrot.slane %v2102, 1
        %v2104 = vmax.f32 %v2102, %v2103
        %v2105 = vsel %vm2062, %v1454, -inf
        %v2106 = vrot.slane %v2105, 4
        %v2107 = vmax.f32 %v2105, %v2106
        %v2108 = vrot.slane %v2107, 2
        %v2109 = vmax.f32 %v2107, %v2108
        %v2110 = vrot.slane %v2109, 1
        %v2111 = vmax.f32 %v2109, %v2110
        %v2112 = vsel %vm2062, %v1477, -inf
        %v2113 = vrot.slane %v2112, 4
        %v2114 = vmax.f32 %v2112, %v2113
        %v2115 = vrot.slane %v2114, 2
        %v2116 = vmax.f32 %v2114, %v2115
        %v2117 = vrot.slane %v2116, 1
        %v2118 = vmax.f32 %v2116, %v2117
        %v2119 = vsel %vm2062, %v1500, -inf
        %v2120 = vrot.slane %v2119, 4
        %v2121 = vmax.f32 %v2119, %v2120
        %v2122 = vrot.slane %v2121, 2
        %v2123 = vmax.f32 %v2121, %v2122
        %v2124 = vrot.slane %v2123, 1
        %v2125 = vmax.f32 %v2123, %v2124
        %v2126 = vsel %vm2062, %v1523, -inf
        %v2127 = vrot.slane %v2126, 4
        %v2128 = vmax.f32 %v2126, %v2127
        %v2129 = vrot.slane %v2128, 2
        %v2130 = vmax.f32 %v2128, %v2129
        %v2131 = vrot.slane %v2130, 1
        %v2132 = vmax.f32 %v2130, %v2131
        %v2133 = vsel %vm2062, %v1546, -inf
        %v2134 = vrot.slane %v2133, 4
        %v2135 = vmax.f32 %v2133, %v2134
        %v2136 = vrot.slane %v2135, 2
        %v2137 = vmax.f32 %v2135, %v2136
        %v2138 = vrot.slane %v2137, 1
        %v2139 = vmax.f32 %v2137, %v2138
        %v2140 = vsel %vm2062, %v1569, -inf
        %v2141 = vrot.slane %v2140, 4
        %v2142 = vmax.f32 %v2140, %v2141
        %v2143 = vrot.slane %v2142, 2
        %v2144 = vmax.f32 %v2142, %v2143
        %v2145 = vrot.slane %v2144, 1
        %v2146 = vmax.f32 %v2144, %v2145
        %v2147 = vsel %vm2062, %v1592, -inf
        %v2148 = vrot.slane %v2147, 4
        %v2149 = vmax.f32 %v2147, %v2148
        %v2150 = vrot.slane %v2149, 2
        %v2151 = vmax.f32 %v2149, %v2150
        %v2152 = vrot.slane %v2151, 1
        %v2153 = vmax.f32 %v2151, %v2152
        %v2154 = vsel %vm2062, %v1615, -inf
        %v2155 = vrot.slane %v2154, 4
        %v2156 = vmax.f32 %v2154, %v2155
        %v2157 = vrot.slane %v2156, 2
        %v2158 = vmax.f32 %v2156, %v2157
        %v2159 = vrot.slane %v2158, 1
        %v2160 = vmax.f32 %v2158, %v2159
        %v2161 = vsel %vm2062, %v1638, -inf
        %v2162 = vrot.slane %v2161, 4
        %v2163 = vmax.f32 %v2161, %v2162
        %v2164 = vrot.slane %v2163, 2
        %v2165 = vmax.f32 %v2163, %v2164
        %v2166 = vrot.slane %v2165, 1
        %v2167 = vmax.f32 %v2165, %v2166
        %v2168 = vsel %vm2062, %v1661, -inf
        %v2169 = vrot.slane %v2168, 4
        %v2170 = vmax.f32 %v2168, %v2169
        %v2171 = vrot.slane %v2170, 2
        %v2172 = vmax.f32 %v2170, %v2171
        %v2173 = vrot.slane %v2172, 1
        %v2174 = vmax.f32 %v2172, %v2173
        %v2175 = vsel %vm2062, %v1684, -inf
        %v2176 = vrot.slane %v2175, 4
        %v2177 = vmax.f32 %v2175, %v2176
        %v2178 = vrot.slane %v2177, 2
        %v2179 = vmax.f32 %v2177, %v2178
        %v2180 = vrot.slane %v2179, 1
        %v2181 = vmax.f32 %v2179, %v2180
        %v2182 = vsel %vm2062, %v1707, -inf
        %v2183 = vrot.slane %v2182, 4
        %v2184 = vmax.f32 %v2182, %v2183
        %v2185 = vrot.slane %v2184, 2
        %v2186 = vmax.f32 %v2184, %v2185
        %v2187 = vrot.slane %v2186, 1
        %v2188 = vmax.f32 %v2186, %v2187
        %v2189 = vsel %vm2062, %v1730, -inf
        %v2190 = vrot.slane %v2189, 4
        %v2191 = vmax.f32 %v2189, %v2190
        %v2192 = vrot.slane %v2191, 2
        %v2193 = vmax.f32 %v2191, %v2192
        %v2194 = vrot.slane %v2193, 1
        %v2195 = vmax.f32 %v2193, %v2194
        %v2196 = vsel %vm2062, %v1753, -inf
        %v2197 = vrot.slane %v2196, 4
        %v2198 = vmax.f32 %v2196, %v2197
        %v2199 = vrot.slane %v2198, 2
        %v2200 = vmax.f32 %v2198, %v2199
        %v2201 = vrot.slane %v2200, 1
        %v2202 = vmax.f32 %v2200, %v2201
        %v2203 = vsel %vm2062, %v1776, -inf
        %v2204 = vrot.slane %v2203, 4
        %v2205 = vmax.f32 %v2203, %v2204
        %v2206 = vrot.slane %v2205, 2
        %v2207 = vmax.f32 %v2205, %v2206
        %v2208 = vrot.slane %v2207, 1
        %v2209 = vmax.f32 %v2207, %v2208
        %v2210 = vsel %vm2062, %v1799, -inf
        %v2211 = vrot.slane %v2210, 4
        %v2212 = vmax.f32 %v2210, %v2211
        %v2213 = vrot.slane %v2212, 2
        %v2214 = vmax.f32 %v2212, %v2213
        %v2215 = vrot.slane %v2214, 1
        %v2216 = vmax.f32 %v2214, %v2215
        %v2217 = vsel %vm2062, %v1822, -inf
        %v2218 = vrot.slane %v2217, 4
        %v2219 = vmax.f32 %v2217, %v2218
        %v2220 = vrot.slane %v2219, 2
        %v2221 = vmax.f32 %v2219, %v2220
        %v2222 = vrot.slane %v2221, 1
        %v2223 = vmax.f32 %v2221, %v2222
        %v2224 = vsel %vm2062, %v1845, -inf
        %v2225 = vrot.slane %v2224, 4
        %v2226 = vmax.f32 %v2224, %v2225
        %v2227 = vrot.slane %v2226, 2
        %v2228 = vmax.f32 %v2226, %v2227
        %v2229 = vrot.slane %v2228, 1
        %v2230 = vmax.f32 %v2228, %v2229
        %v2231 = vsel %vm2062, %v1868, -inf
        %v2232 = vrot.slane %v2231, 4
        %v2233 = vmax.f32 %v2231, %v2232
        %v2234 = vrot.slane %v2233, 2
        %v2235 = vmax.f32 %v2233, %v2234
        %v2236 = vrot.slane %v2235, 1
        %v2237 = vmax.f32 %v2235, %v2236
        %v2238 = vsel %vm2062, %v1891, -inf
        %v2239 = vrot.slane %v2238, 4
        %v2240 = vmax.f32 %v2238, %v2239
        %v2241 = vrot.slane %v2240, 2
        %v2242 = vmax.f32 %v2240, %v2241
        %v2243 = vrot.slane %v2242, 1
        %v2244 = vmax.f32 %v2242, %v2243
        %v2245 = vsel %vm2062, %v1914, -inf
        %v2246 = vrot.slane %v2245, 4
        %v2247 = vmax.f32 %v2245, %v2246
        %v2248 = vrot.slane %v2247, 2
        %v2249 = vmax.f32 %v2247, %v2248
        %v2250 = vrot.slane %v2249, 1
        %v2251 = vmax.f32 %v2249, %v2250
        %v2252 = vsel %vm2062, %v1937, -inf
        %v2253 = vrot.slane %v2252, 4
        %v2254 = vmax.f32 %v2252, %v2253
        %v2255 = vrot.slane %v2254, 2
        %v2256 = vmax.f32 %v2254, %v2255
        %v2257 = vrot.slane %v2256, 1
        %v2258 = vmax.f32 %v2256, %v2257
        %v2259 = vsel %vm2062, %v1960, -inf
        %v2260 = vrot.slane %v2259, 4
        %v2261 = vmax.f32 %v2259, %v2260
        %v2262 = vrot.slane %v2261, 2
        %v2263 = vmax.f32 %v2261, %v2262
        %v2264 = vrot.slane %v2263, 1
        %v2265 = vmax.f32 %v2263, %v2264
        %v2266 = vsel %vm2062, %v1983, -inf
        %v2267 = vrot.slane %v2266, 4
        %v2268 = vmax.f32 %v2266, %v2267
        %v2269 = vrot.slane %v2268, 2
        %v2270 = vmax.f32 %v2268, %v2269
        %v2271 = vrot.slane %v2270, 1
        %v2272 = vmax.f32 %v2270, %v2271
        %v2273 = vsel %vm2062, %v2006, -inf
        %v2274 = vrot.slane %v2273, 4
        %v2275 = vmax.f32 %v2273, %v2274
        %v2276 = vrot.slane %v2275, 2
        %v2277 = vmax.f32 %v2275, %v2276
        %v2278 = vrot.slane %v2277, 1
        %v2279 = vmax.f32 %v2277, %v2278
        %v2280 = vsel %vm2062, %v2029, -inf
        %v2281 = vrot.slane %v2280, 4
        %v2282 = vmax.f32 %v2280, %v2281
        %v2283 = vrot.slane %v2282, 2
        %v2284 = vmax.f32 %v2282, %v2283
        %v2285 = vrot.slane %v2284, 1
        %v2286 = vmax.f32 %v2284, %v2285
        %v2287 = vpack.c.bf16 %v2069, %v2069
        %v2288 = vpack.c.bf16 %v2076, %v2076
        %v2289 = vpack.c.bf16 %v2083, %v2083
        %v2290 = vpack.c.bf16 %v2090, %v2090
        %v2291 = vpack.c.bf16 %v2097, %v2097
        %v2292 = vpack.c.bf16 %v2104, %v2104
        %v2293 = vpack.c.bf16 %v2111, %v2111
        %v2294 = vpack.c.bf16 %v2118, %v2118
        %v2295 = vpack.c.bf16 %v2125, %v2125
        %v2296 = vpack.c.bf16 %v2132, %v2132
        %v2297 = vpack.c.bf16 %v2139, %v2139
        %v2298 = vpack.c.bf16 %v2146, %v2146
        %v2299 = vpack.c.bf16 %v2153, %v2153
        %v2300 = vpack.c.bf16 %v2160, %v2160
        %v2301 = vpack.c.bf16 %v2167, %v2167
        %v2302 = vpack.c.bf16 %v2174, %v2174
        %v2303 = vpack.c.bf16 %v2181, %v2181
        %v2304 = vpack.c.bf16 %v2188, %v2188
        %v2305 = vpack.c.bf16 %v2195, %v2195
        %v2306 = vpack.c.bf16 %v2202, %v2202
        %v2307 = vpack.c.bf16 %v2209, %v2209
        %v2308 = vpack.c.bf16 %v2216, %v2216
        %v2309 = vpack.c.bf16 %v2223, %v2223
        %v2310 = vpack.c.bf16 %v2230, %v2230
        %v2311 = vpack.c.bf16 %v2237, %v2237
        %v2312 = vpack.c.bf16 %v2244, %v2244
        %v2313 = vpack.c.bf16 %v2251, %v2251
        %v2314 = vpack.c.bf16 %v2258, %v2258
        %v2315 = vpack.c.bf16 %v2265, %v2265
        %v2316 = vpack.c.bf16 %v2272, %v2272
        %v2317 = vpack.c.bf16 %v2279, %v2279
        %v2318 = vpack.c.bf16 %v2286, %v2286
        %v2351 = vunpack.c.l.b16 %v2287
        %v2352 = vunpack.c.l.b16 %v2288
        %v2353 = vunpack.c.l.b16 %v2289
        %v2354 = vunpack.c.l.b16 %v2290
        %v2355 = vunpack.c.l.b16 %v2291
        %v2356 = vunpack.c.l.b16 %v2292
        %v2357 = vunpack.c.l.b16 %v2293
        %v2358 = vunpack.c.l.b16 %v2294
        %v2359 = vunpack.c.l.b16 %v2295
        %v2360 = vunpack.c.l.b16 %v2296
        %v2361 = vunpack.c.l.b16 %v2297
        %v2362 = vunpack.c.l.b16 %v2298
        %v2363 = vunpack.c.l.b16 %v2299
        %v2364 = vunpack.c.l.b16 %v2300
        %v2365 = vunpack.c.l.b16 %v2301
        %v2366 = vunpack.c.l.b16 %v2302
        %v2367 = vunpack.c.l.b16 %v2303
        %v2368 = vunpack.c.l.b16 %v2304
        %v2369 = vunpack.c.l.b16 %v2305
        %v2370 = vunpack.c.l.b16 %v2306
        %v2371 = vunpack.c.l.b16 %v2307
        %v2372 = vunpack.c.l.b16 %v2308
        %v2373 = vunpack.c.l.b16 %v2309
        %v2374 = vunpack.c.l.b16 %v2310
        %v2375 = vunpack.c.l.b16 %v2311
        %v2376 = vunpack.c.l.b16 %v2312
        %v2377 = vunpack.c.l.b16 %v2313
        %v2378 = vunpack.c.l.b16 %v2314
        %v2379 = vunpack.c.l.b16 %v2315
        %v2380 = vunpack.c.l.b16 %v2316
        %v2381 = vunpack.c.l.b16 %v2317
        %v2382 = vunpack.c.l.b16 %v2318
        %v2383 = vpack.c.b16 %v2351, %v2351
        %v2384 = vpack.c.b16 %v2352, %v2352
        %v2385 = vpack.c.b16 %v2353, %v2353
        %v2386 = vpack.c.b16 %v2354, %v2354
        %v2387 = vpack.c.b16 %v2355, %v2355
        %v2388 = vpack.c.b16 %v2356, %v2356
        %v2389 = vpack.c.b16 %v2357, %v2357
        %v2390 = vpack.c.b16 %v2358, %v2358
        %v2391 = vpack.c.b16 %v2359, %v2359
        %v2392 = vpack.c.b16 %v2360, %v2360
        %v2393 = vpack.c.b16 %v2361, %v2361
        %v2394 = vpack.c.b16 %v2362, %v2362
        %v2395 = vpack.c.b16 %v2363, %v2363
        %v2396 = vpack.c.b16 %v2364, %v2364
        %v2397 = vpack.c.b16 %v2365, %v2365
        %v2398 = vpack.c.b16 %v2366, %v2366
        %v2399 = vpack.c.b16 %v2367, %v2367
        %v2400 = vpack.c.b16 %v2368, %v2368
        %v2401 = vpack.c.b16 %v2369, %v2369
        %v2402 = vpack.c.b16 %v2370, %v2370
        %v2403 = vpack.c.b16 %v2371, %v2371
        %v2404 = vpack.c.b16 %v2372, %v2372
        %v2405 = vpack.c.b16 %v2373, %v2373
        %v2406 = vpack.c.b16 %v2374, %v2374
        %v2407 = vpack.c.b16 %v2375, %v2375
        %v2408 = vpack.c.b16 %v2376, %v2376
        %v2409 = vpack.c.b16 %v2377, %v2377
        %v2410 = vpack.c.b16 %v2378, %v2378
        %v2411 = vpack.c.b16 %v2379, %v2379
        %v2412 = vpack.c.b16 %v2380, %v2380
        %v2413 = vpack.c.b16 %v2381, %v2381
        %v2414 = vpack.c.b16 %v2382, %v2382
        %v2415 = vunpack.c.l.b16 %v2383
        %v2416 = vunpack.c.l.b16 %v2384
        %v2417 = vunpack.c.l.b16 %v2385
        %v2418 = vunpack.c.l.b16 %v2386
        %v2419 = vunpack.c.l.b16 %v2387
        %v2420 = vunpack.c.l.b16 %v2388
        %v2421 = vunpack.c.l.b16 %v2389
        %v2422 = vunpack.c.l.b16 %v2390
        %v2423 = vunpack.c.l.b16 %v2391
        %v2424 = vunpack.c.l.b16 %v2392
        %v2425 = vunpack.c.l.b16 %v2393
        %v2426 = vunpack.c.l.b16 %v2394
        %v2427 = vunpack.c.l.b16 %v2395
        %v2428 = vunpack.c.l.b16 %v2396
        %v2429 = vunpack.c.l.b16 %v2397
        %v2430 = vunpack.c.l.b16 %v2398
        %v2431 = vunpack.c.l.b16 %v2399
        %v2432 = vunpack.c.l.b16 %v2400
        %v2433 = vunpack.c.l.b16 %v2401
        %v2434 = vunpack.c.l.b16 %v2402
        %v2435 = vunpack.c.l.b16 %v2403
        %v2436 = vunpack.c.l.b16 %v2404
        %v2437 = vunpack.c.l.b16 %v2405
        %v2438 = vunpack.c.l.b16 %v2406
        %v2439 = vunpack.c.l.b16 %v2407
        %v2440 = vunpack.c.l.b16 %v2408
        %v2441 = vunpack.c.l.b16 %v2409
        %v2442 = vunpack.c.l.b16 %v2410
        %v2443 = vunpack.c.l.b16 %v2411
        %v2444 = vunpack.c.l.b16 %v2412
        %v2445 = vunpack.c.l.b16 %v2413
        %v2446 = vunpack.c.l.b16 %v2414
        %vm2447 = vcmask 1041409
        %v2448 = vsel %vm2447, %v2416, %v2415
        %vm2449 = vcmask 1042434
        %v2450 = vsel %vm2449, %v2417, %v2448
        %vm2451 = vcmask 1043459
        %v2452 = vsel %vm2451, %v2418, %v2450
        %vm2453 = vcmask 1044484
        %v2454 = vsel %vm2453, %v2419, %v2452
        %vm2455 = vcmask 1045509
        %v2456 = vsel %vm2455, %v2420, %v2454
        %vm2457 = vcmask 1046534
        %v2458 = vsel %vm2457, %v2421, %v2456
        %vm2459 = vcmask 1047559
        %v2460 = vsel %vm2459, %v2422, %v2458
        %v2461 = vsel %vm2447, %v2424, %v2423
        %v2462 = vsel %vm2449, %v2425, %v2461
        %v2463 = vsel %vm2451, %v2426, %v2462
        %v2464 = vsel %vm2453, %v2427, %v2463
        %v2465 = vsel %vm2455, %v2428, %v2464
        %v2466 = vsel %vm2457, %v2429, %v2465
        %v2467 = vsel %vm2459, %v2430, %v2466
        %v2468 = vsel %vm2447, %v2432, %v2431
        %v2469 = vsel %vm2449, %v2433, %v2468
        %v2470 = vsel %vm2451, %v2434, %v2469
        %v2471 = vsel %vm2453, %v2435, %v2470
        %v2472 = vsel %vm2455, %v2436, %v2471
        %v2473 = vsel %vm2457, %v2437, %v2472
        %v2474 = vsel %vm2459, %v2438, %v2473
        %v2475 = vsel %vm2447, %v2440, %v2439
        %v2476 = vsel %vm2449, %v2441, %v2475
        %v2477 = vsel %vm2451, %v2442, %v2476
        %v2478 = vsel %vm2453, %v2443, %v2477
        %v2479 = vsel %vm2455, %v2444, %v2478
        %v2480 = vsel %vm2457, %v2445, %v2479
        %v2481 = vsel %vm2459, %v2446, %v2480
        %v2482 = vpack.c.b16 %v2460, %v2460
        %v2483 = vpack.c.b16 %v2467, %v2467
        %v2484 = vpack.c.b16 %v2474, %v2474
        %v2485 = vpack.c.b16 %v2481, %v2481
        %2490 = vst [vmem:[%s163] sm:$0xf] %v2482
        %2491 = vst [vmem:[%s163 + $0x4] sm:$0xf] %v2483
        %2492 = vst [vmem:[%s163 + $0x8] sm:$0xf] %v2484
        %2493 = vst [vmem:[%s163 + $0xc] sm:$0xf] %v2485
        %s2494 = sand.u32 %s93, 1
        %s2495 = scalar_lea.sflag [#allocation3], %s2494
        %s2496 = sand.u32 %s93, 1
        %s2497 = smul.addr %s2496, 16
        %s2498 = scalar_lea.vmem [#allocation2], %s2497
        // Predicated region
        $region33: #{tpu_custom_call.1} parent=31 // pred_check
          %p2499 = pneg %p103
        $region34: #{tpu_custom_call.1} parent=31 // pred_check_branch
          %2501 = sbr.rel (%p2499) target = $region36
        $region35: #{tpu_custom_call.1} parent=31 // pred_region
          %s2503 = ssub.s32 256, 256
          %2504 = vsyncadd %s2495, %s2503
          %s2505 = smul.addr %s17, 4
          %s2506 = smul.addr %s2505, 64
          %s2507 = scalar_lea.hbm %s3, %s2506
          %s2508 = sshll.u32 %s2498, 4
          %s2509 = int_to_ptr.vmem [resolvable:$true] %s2508
          %2514 = dma.vmem_to_hbm [thread:$0]  %s2509, 256, %s2507, %s2495, 64, 64, 4
        $region36: #{tpu_custom_call.1} parent=31 // pred_fallthru
          _
      $region32: #{tpu_custom_call.1} parent=5 // pred_fallthru
        _
      %p2515 = scmp.le.s32.totalorder 2, %s12
      // Predicated region
      $region37: #{tpu_custom_call.1} parent=5 // pred_check
        %p2516 = pneg %p2515
      $region38: #{tpu_custom_call.1} parent=5 // pred_check_branch
        %2518 = sbr.rel (%p2516) target = $region40
      $region39: #{tpu_custom_call.1} parent=5 // pred_region
        %s2519 = ssub.s32 %s12, 2
        // Predicated region
        $region41: #{tpu_custom_call.1} parent=39 // pred_check
          %p2520 = pneg %p109
        $region42: #{tpu_custom_call.1} parent=39 // pred_check_branch
          %2522 = sbr.rel (%p2520) target = $region44
        $region43: #{tpu_custom_call.1} parent=39 // pred_region
          %s2523 = sand.u32 %s94, 1
          %s2524 = scalar_lea.sflag [#allocation3], %s2523
          %s2525 = sand.u32 %s94, 1
          %s2526 = smul.addr %s2525, 16
          %s2527 = scalar_lea.vmem [#allocation2], %s2526
          %2528 = dma.done %s2524, 256
        $region44: #{tpu_custom_call.1} parent=39 // pred_fallthru
          _
      $region40: #{tpu_custom_call.1} parent=5 // pred_fallthru
        _
    $region6: #{tpu_custom_call.1} parent=1 // loop_footer
      %s16 = sadd.s32 1, %s12
    $region7: #{tpu_custom_call.1} parent=1 // loop_footer_branch
      %11 = sbr.rel target = $region3
    $region8: #{tpu_custom_call.1} parent=1 // loop_exit
      _
    %2529 = vsyncpa [#allocation3], 1
    %s2530 = scalar_lea.sflag [#allocation3], 1
    %2531 = vsyncpa %s2530, 1

</llo_original>
